<compile_context>
chip_gen: v7x
topology: tpu7x:2x2x1
jax: 0.10.0
libtpu: 0.0.40
codegen_flags: <defaults>
</compile_context>

<pallas_src>
import math

import jax
import jax.numpy as jnp
import numpy as np
from jax.experimental import pallas as pl
from jax.experimental.pallas import tpu as pltpu

_INV_SQRT2 = 1.0 / math.sqrt(2.0)


def _erf(x):
    # Abramowitz & Stegun 7.1.26 rational approximation, |err| <= 1.5e-7.
    # Divide runs on the EUP via pl.reciprocal(approx=True); remaining ops are
    # exp / mul / add / abs / where -> safe Mosaic lowering.
    p = 0.3275911
    a1, a2, a3, a4, a5 = (0.254829592, -0.284496736, 1.421413741,
                          -1.453152027, 1.061405429)
    ax = jnp.abs(x)
    t = pl.reciprocal(1.0 + p * ax, approx=True)
    poly = t * (a1 + t * (a2 + t * (a3 + t * (a4 + t * a5))))
    y = 1.0 - poly * jnp.exp(-ax * ax)
    return jnp.where(x < 0.0, -y, y)


def _gelu_exact(x):
    # Exact (erf-based) GELU, matching torch.nn.GELU() default.
    return 0.5 * x * (1.0 + _erf(x * _INV_SQRT2))


def node_logits_kernel(x_ref, w1_ref, b1_ref, w2_ref, b2_ref, o_ref):
    """One grid step processes a (tn, D) row-tile of x.

    x_ref  : bf16[tn, D]     node features (row tile)
    w1_ref : bf16[D, D]      first Linear weight, x @ W layout
    b1_ref : f32 [1, D]
    w2_ref : bf16[D, Opad]   second Linear weight, x @ W layout (lane-padded)
    b2_ref : f32 [1, Opad]
    o_ref  : f32 [tn, Opad]
    """
    x = x_ref[...]                                                     # bf16 (tn, D)
    # Layer 1: bf16 MXU operands, f32 accumulation.
    h = jnp.dot(x, w1_ref[...], preferred_element_type=jnp.float32) + b1_ref[...]
    h = _gelu_exact(h)                                                 # f32 (tn, D)
    # Layer 2: cast hidden to bf16 once; f32 accumulation on the MXU.
    o = jnp.dot(h.astype(jnp.bfloat16), w2_ref[...],
                preferred_element_type=jnp.float32) + b2_ref[...]
    o_ref[...] = o.astype(o_ref.dtype)


def node_logits_pallas(x, params, *, tn=256):
    """x: (N, node_dim).

    params use PyTorch nn.Linear layout:
      w1: (node_dim, node_dim)  [out, in]
      b1: (node_dim,)
      w2: (output_dim, node_dim) [out, in]
      b2: (output_dim,)
    """
    n, d = x.shape
    o_dim = params["w2"].shape[0]

    # PyTorch (out, in) -> x @ W layout, bf16 for the MXU.
    w1 = jnp.asarray(params["w1"]).T.astype(jnp.bfloat16)              # (D, D)
    b1 = jnp.asarray(params["b1"]).astype(jnp.float32).reshape(1, d)   # (1, D)
    w2 = jnp.asarray(params["w2"]).T.astype(jnp.float32)               # (D, O)
    b2 = jnp.asarray(params["b2"]).astype(jnp.float32).reshape(1, -1)  # (1, O)

    # Lane-dense output: pad O up to a multiple of 128 (zeros), slice after.
    o_pad = pl.cdiv(o_dim, 128) * 128
    if o_pad != o_dim:
        w2 = jnp.pad(w2, ((0, 0), (0, o_pad - o_dim)))
        b2 = jnp.pad(b2, ((0, 0), (0, o_pad - o_dim)))
    w2 = w2.astype(jnp.bfloat16)

    # bf16 x from HBM (halves the dominant read); pad node axis to tile.
    xb = x.astype(jnp.bfloat16)
    n_pad = pl.cdiv(n, tn) * tn
    if n_pad != n:
        xb = jnp.pad(xb, ((0, n_pad - n), (0, 0)))

    grid = (n_pad // tn,)
    out = pl.pallas_call(
        node_logits_kernel,
        out_shape=jax.ShapeDtypeStruct((n_pad, o_pad), jnp.float32),
        grid_spec=pltpu.PrefetchScalarGridSpec(
            num_scalar_prefetch=0,
            grid=grid,
            in_specs=[
                pl.BlockSpec((tn, d), lambda i: (i, 0)),       # x row tile
                pl.BlockSpec((d, d), lambda i: (0, 0)),        # W1 (grid-invariant)
                pl.BlockSpec((1, d), lambda i: (0, 0)),        # b1 (grid-invariant)
                pl.BlockSpec((d, o_pad), lambda i: (0, 0)),    # W2 (grid-invariant)
                pl.BlockSpec((1, o_pad), lambda i: (0, 0)),    # b2 (grid-invariant)
            ],
            out_specs=pl.BlockSpec((tn, o_pad), lambda i: (i, 0)),
        ),
        compiler_params=pltpu.CompilerParams(
            dimension_semantics=("parallel",),   # rows independent -> both TCs on v7x
        ),
    )(xb, w1, b1, w2, b2)
    return out[:n, :o_dim]


# ---------------- pure-JAX reference (exact-GELU, full-f32, PyTorch layout) ----------------
def node_logits_ref(x, params):
    hp = jax.lax.Precision.HIGHEST
    h = jnp.dot(x, params["w1"].T, precision=hp) + params["b1"][None, :]
    h = jax.nn.gelu(h, approximate=False)        # exact erf GELU == nn.GELU() default
    return jnp.dot(h, params["w2"].T, precision=hp) + params["b2"][None, :]


if __name__ == "__main__":
    key = jax.random.PRNGKey(0)
    k = jax.random.split(key, 5)

    # Shapes consistent with the module: 500 graph nodes, node_dim=128,
    # output_dim=1 (logit head).
    N, D, O = 500, 128, 1
    bound = 1.0 / math.sqrt(D)

    # Snap inputs/weights onto the bf16 grid (values stored in f32) so the
    # wrapper's bf16 casts are lossless and the check tests kernel logic rather
    # than rounding mode.
    def snap(v):
        return v.astype(jnp.bfloat16).astype(jnp.float32)

    params = {
        # PyTorch nn.Linear layout: (out_features, in_features).
        "w1": snap(jax.random.uniform(k[0], (D, D), jnp.float32, -bound, bound)),
        "b1": snap(jax.random.uniform(k[1], (D,), jnp.float32, -bound, bound)),
        "w2": snap(jax.random.uniform(k[2], (O, D), jnp.float32, -bound, bound)),
        "b2": snap(jax.random.uniform(k[3], (O,), jnp.float32, -bound, bound)),
    }
    x = snap(jax.random.normal(k[4], (N, D), jnp.float32))

    out = node_logits_pallas(x, params, tn=256)
    out = jax.block_until_ready(out)
    assert out.shape == (N, O), out.shape

    ref = node_logits_ref(x, params)
    # Tolerance covers bf16 hidden-activation rounding, the approx EUP
    # reciprocal and the 1.5e-7 erf approximation; real bugs (missing bias,
    # wrong activation, transposed weight) produce errors >= 1e-1.
    np.testing.assert_allclose(np.asarray(out), np.asarray(ref), rtol=5e-3, atol=5e-3)

    print("KERNEL_OK")
</pallas_src>

<mosaic_0001>
module attributes {stable_mosaic.version = 11 : i64} {
  func.func @node_logits_kernel(%arg0: i32, %arg1: memref<256x128xbf16, #tpu.memory_space<vmem>>, %arg2: memref<128x128xbf16, #tpu.memory_space<vmem>>, %arg3: memref<1x128xf32, #tpu.memory_space<vmem>>, %arg4: memref<128x128xbf16, #tpu.memory_space<vmem>>, %arg5: memref<1x128xf32, #tpu.memory_space<vmem>>, %arg6: memref<256x128xf32, #tpu.memory_space<vmem>>) attributes {dimension_semantics = [#tpu.dimension_semantics<parallel>], iteration_bounds = array<i64: 2>, scalar_prefetch = 0 : i64, scratch_operands = 0 : i64, tpu.core_type = #tpu.core_type<tc>, window_params = [{transform_indices = @transform_0, window_bounds = array<i64: 256, 128>}, {pipeline_mode = #tpu.pipeline_mode<synchronous>, transform_indices = @transform_1, window_bounds = array<i64: 128, 128>}, {pipeline_mode = #tpu.pipeline_mode<synchronous>, transform_indices = @transform_2, window_bounds = array<i64: 1, 128>}, {pipeline_mode = #tpu.pipeline_mode<synchronous>, transform_indices = @transform_3, window_bounds = array<i64: 128, 128>}, {pipeline_mode = #tpu.pipeline_mode<synchronous>, transform_indices = @transform_4, window_bounds = array<i64: 1, 128>}, {transform_indices = @transform_5, window_bounds = array<i64: 256, 128>}]} {
    %c0 = arith.constant 0 : index
    %c0_0 = arith.constant 0 : index
    %0 = vector.load %arg1[%c0, %c0_0] : memref<256x128xbf16, #tpu.memory_space<vmem>>, vector<256x128xbf16>
    %c0_1 = arith.constant 0 : index
    %c0_2 = arith.constant 0 : index
    %1 = vector.load %arg2[%c0_1, %c0_2] : memref<128x128xbf16, #tpu.memory_space<vmem>>, vector<128x128xbf16>
    %cst = arith.constant dense<0.000000e+00> : vector<256x128xf32>
    %2 = tpu.matmul %0, %1, %cst {dimension_numbers = #tpu.dot_dimension_numbers<[1], [0], [0], [1], [0, 0, 1, 1], [], []>} : vector<256x128xbf16>, vector<128x128xbf16>, vector<256x128xf32> -> vector<256x128xf32>
    %c0_3 = arith.constant 0 : index
    %c0_4 = arith.constant 0 : index
    %3 = vector.load %arg3[%c0_3, %c0_4] : memref<1x128xf32, #tpu.memory_space<vmem>>, vector<1x128xf32>
    %4 = vector.broadcast %3 : vector<1x128xf32> to vector<256x128xf32>
    %5 = arith.addf %2, %4 : vector<256x128xf32>
    %cst_5 = arith.constant 5.000000e-01 : f32
    %6 = vector.broadcast %cst_5 : f32 to vector<256x128xf32>
    %7 = arith.mulf %6, %5 : vector<256x128xf32>
    %cst_6 = arith.constant 0.707106769 : f32
    %8 = vector.broadcast %cst_6 : f32 to vector<256x128xf32>
    %9 = arith.mulf %5, %8 : vector<256x128xf32>
    %10 = math.absf %9 : vector<256x128xf32>
    %cst_7 = arith.constant 0.327591091 : f32
    %11 = vector.broadcast %cst_7 : f32 to vector<256x128xf32>
    %12 = arith.mulf %11, %10 : vector<256x128xf32>
    %cst_8 = arith.constant 1.000000e+00 : f32
    %13 = vector.broadcast %cst_8 : f32 to vector<256x128xf32>
    %14 = arith.addf %13, %12 : vector<256x128xf32>
    %15 = tpu.reciprocal %14 {approx = true} : vector<256x128xf32> -> vector<256x128xf32>
    %cst_9 = arith.constant 1.06140542 : f32
    %16 = vector.broadcast %cst_9 : f32 to vector<256x128xf32>
    %17 = arith.mulf %15, %16 : vector<256x128xf32>
    %cst_10 = arith.constant -1.45315206 : f32
    %18 = vector.broadcast %cst_10 : f32 to vector<256x128xf32>
    %19 = arith.addf %18, %17 : vector<256x128xf32>
    %20 = arith.mulf %15, %19 : vector<256x128xf32>
    %cst_11 = arith.constant 1.42141378 : f32
    %21 = vector.broadcast %cst_11 : f32 to vector<256x128xf32>
    %22 = arith.addf %21, %20 : vector<256x128xf32>
    %23 = arith.mulf %15, %22 : vector<256x128xf32>
    %cst_12 = arith.constant -0.284496725 : f32
    %24 = vector.broadcast %cst_12 : f32 to vector<256x128xf32>
    %25 = arith.addf %24, %23 : vector<256x128xf32>
    %26 = arith.mulf %15, %25 : vector<256x128xf32>
    %cst_13 = arith.constant 0.254829586 : f32
    %27 = vector.broadcast %cst_13 : f32 to vector<256x128xf32>
    %28 = arith.addf %27, %26 : vector<256x128xf32>
    %29 = arith.mulf %15, %28 : vector<256x128xf32>
    %cst_14 = arith.constant 0.000000e+00 : f32
    %30 = vector.broadcast %cst_14 : f32 to vector<256x128xf32>
    %31 = arith.subf %30, %10 : vector<256x128xf32>
    %32 = arith.mulf %31, %10 : vector<256x128xf32>
    %33 = math.exp %32 : vector<256x128xf32>
    %34 = arith.mulf %29, %33 : vector<256x128xf32>
    %cst_15 = arith.constant 1.000000e+00 : f32
    %35 = vector.broadcast %cst_15 : f32 to vector<256x128xf32>
    %36 = arith.subf %35, %34 : vector<256x128xf32>
    %cst_16 = arith.constant 0.000000e+00 : f32
    %37 = vector.broadcast %cst_16 : f32 to vector<256x128xf32>
    %38 = arith.cmpf olt, %9, %37 : vector<256x128xf32>
    %cst_17 = arith.constant 0.000000e+00 : f32
    %39 = vector.broadcast %cst_17 : f32 to vector<256x128xf32>
    %40 = arith.subf %39, %36 : vector<256x128xf32>
    %41 = arith.select %38, %40, %36 : vector<256x128xi1>, vector<256x128xf32>
    %cst_18 = arith.constant 1.000000e+00 : f32
    %42 = vector.broadcast %cst_18 : f32 to vector<256x128xf32>
    %43 = arith.addf %42, %41 : vector<256x128xf32>
    %44 = arith.mulf %7, %43 : vector<256x128xf32>
    %45 = arith.truncf %44 : vector<256x128xf32> to vector<256x128xbf16>
    %c0_19 = arith.constant 0 : index
    %c0_20 = arith.constant 0 : index
    %46 = vector.load %arg4[%c0_19, %c0_20] : memref<128x128xbf16, #tpu.memory_space<vmem>>, vector<128x128xbf16>
    %cst_21 = arith.constant dense<0.000000e+00> : vector<256x128xf32>
    %47 = tpu.matmul %45, %46, %cst_21 {dimension_numbers = #tpu.dot_dimension_numbers<[1], [0], [0], [1], [0, 0, 1, 1], [], []>} : vector<256x128xbf16>, vector<128x128xbf16>, vector<256x128xf32> -> vector<256x128xf32>
    %c0_22 = arith.constant 0 : index
    %c0_23 = arith.constant 0 : index
    %48 = vector.load %arg5[%c0_22, %c0_23] : memref<1x128xf32, #tpu.memory_space<vmem>>, vector<1x128xf32>
    %49 = vector.broadcast %48 : vector<1x128xf32> to vector<256x128xf32>
    %50 = arith.addf %47, %49 : vector<256x128xf32>
    %c0_24 = arith.constant 0 : index
    %c0_25 = arith.constant 0 : index
    %51 = vector.load %arg6[%c0_24, %c0_25] : memref<256x128xf32, #tpu.memory_space<vmem>>, vector<256x128xf32>
    tpu.vector_store %arg6[%c0_24, %c0_25], %50 {strides = array<i32>} : memref<256x128xf32, #tpu.memory_space<vmem>>, vector<256x128xf32>,
    return
  }
  func.func @transform_0(%arg0: i32) -> (i32, i32) {
    %c0_i32 = arith.constant 0 : i32
    %c0_i32_0 = arith.constant 0 : i32
    return %arg0, %c0_i32 : i32, i32
  }
  func.func @transform_1(%arg0: i32) -> (i32, i32) {
    %c0_i32 = arith.constant 0 : i32
    %c0_i32_0 = arith.constant 0 : i32
    %c0_i32_1 = arith.constant 0 : i32
    return %c0_i32, %c0_i32_0 : i32, i32
  }
  func.func @transform_2(%arg0: i32) -> (i32, i32) {
    %c0_i32 = arith.constant 0 : i32
    %c0_i32_0 = arith.constant 0 : i32
    %c0_i32_1 = arith.constant 0 : i32
    return %c0_i32, %c0_i32_0 : i32, i32
  }
  func.func @transform_3(%arg0: i32) -> (i32, i32) {
    %c0_i32 = arith.constant 0 : i32
    %c0_i32_0 = arith.constant 0 : i32
    %c0_i32_1 = arith.constant 0 : i32
    return %c0_i32, %c0_i32_0 : i32, i32
  }
  func.func @transform_4(%arg0: i32) -> (i32, i32) {
    %c0_i32 = arith.constant 0 : i32
    %c0_i32_0 = arith.constant 0 : i32
    %c0_i32_1 = arith.constant 0 : i32
    return %c0_i32, %c0_i32_0 : i32, i32
  }
  func.func @transform_5(%arg0: i32) -> (i32, i32) {
    %c0_i32 = arith.constant 0 : i32
    %c0_i32_0 = arith.constant 0 : i32
    return %arg0, %c0_i32 : i32, i32
  }
}

</mosaic_0001>

<llo_original>
// kernel: tpu_custom_call.1
$region0: #{tpu_custom_call.1}
  #allocation0 [shape = 'u32[]', space=smem, size = 0x4, offset = 0x4, fixed_abs, tag = 'smem constant byte address 0x4 - core index']
  #allocation1 [shape = 'u32[144,128]{1,0:T(1,128)}', space=vmem, size = 0x12000, scoped, tag = 'internal scratch']
  %s0 = inlined_call_operand.hbm [shape: bf16[512,128], index: 0, kind: input, shape index: {}]
  %s1 = inlined_call_operand.hbm [shape: bf16[128,128], index: 1, kind: input, shape index: {}]
  %s2 = inlined_call_operand.vmem [shape: f32[1,128], index: 2, kind: input, shape index: {}]
  %s3 = inlined_call_operand.hbm [shape: bf16[128,128], index: 3, kind: input, shape index: {}]
  %s4 = inlined_call_operand.vmem [shape: f32[1,128], index: 4, kind: input, shape index: {}]
  %s5 = inlined_call_operand.hbm [shape: f32[512,128], index: 5, kind: output, shape index: {}]
  %s6 = sld [smem:[#allocation0]]
  $region65: #{tpu_custom_call.1} parent=0
    _
  %s8 = ssub.s32 1, %s6
  %s9 = scalar_select 0, %s8, %s6
  $region1: #{tpu_custom_call.1} parent=0
    #allocation2 [shape = 'u8[131072]{0}', space=vmem, size = 0x20000, scoped, tag = 'input window, operand 0']
    #allocation3 [shape = 's32[2]{0}', space=sflag, size = 0x8, scoped, tag = 'scoped memory for tpu_custom_call.1']
    #allocation4 [shape = 's32[2]{0}', space=sflag, size = 0x8, scoped, tag = 'scoped memory for tpu_custom_call.1']
    #allocation5 [shape = 'u8[32768]{0}', space=vmem, size = 0x8000, scoped, tag = 'input window, operand 1, single buffered']
    #allocation6 [shape = 's32[1]{0}', space=sflag, size = 0x4, scoped, tag = 'scoped memory for tpu_custom_call.1']
    #allocation7 [shape = 'u8[32768]{0}', space=vmem, size = 0x8000, scoped, tag = 'input window, operand 3, single buffered']
    #allocation8 [shape = 'u8[262144]{0}', space=vmem, size = 0x40000, scoped, tag = 'output window, operand 0']
    %10 = vsyncpa [#allocation3], 0
    %s11 = scalar_lea.sflag [#allocation3], 1
    %12 = vsyncpa %s11, 0
    %13 = vsyncpa [#allocation6], 0
    %14 = vsyncpa [#allocation4], 0
    %s15 = scalar_lea.sflag [#allocation4], 1
    %16 = vsyncpa %s15, 0
    loop: start=0, step=1, limit=4
    $region2: #{tpu_custom_call.1} parent=1 // loop_pre_header
      _
    $region3: #{tpu_custom_call.1} parent=1 // loop_header
      %s18 = sphi 0, %s22
      %p19 = scmp.ge.s32.totalorder %s18, 4
      %s28 = sphi 0, %s30
      %s31 = sphi 0, %s28
      %s32 = sphi 0, %s31
      %s48 = sphi 0, %s32
      %s52 = sphi 0, %s52
      %s54 = sphi 0, %s52
      %s55 = sphi 0, %s54
      %s69 = sphi 0, %s55
      %s73 = sphi 0, %s73
      %s75 = sphi 0, %s73
      %s76 = sphi 0, %s75
      %s90 = sphi 0, %s76
      %s94 = sphi 0, %s94
      %s96 = sphi 0, %s94
      %s97 = sphi 0, %s96
      %s111 = sphi 0, %s97
      %s115 = sphi 0, %s115
      %s117 = sphi 0, %s115
      %s118 = sphi 0, %s117
      %s132 = sphi 0, %s118
      %s138 = sphi 0, %s140
      %s141 = sphi 0, %s138
      %s142 = sphi 0, %s141
      %s158 = sphi 0, %s142
    $region4: #{tpu_custom_call.1} parent=1 // loop_header_branch
      %21 = sbr.rel (%p19) target = $region8
    $region5: #{tpu_custom_call.1} parent=1 // loop_body
      %s23 = ssub.s32 %s18, 1
      %s24 = ssub.s32 %s18, 2
      %s25 = sadd.s32 %s18, 1
      %s26 = ssub.s32 %s18, %s25
      %p27 = scmp.eq.s32.totalorder %s26, 0
      %s29 = sadd.s32 %s28, 1
      %s30 = scalar_select %p27, %s28, %s29
      %p33 = pneg %p27
      %p34 = scmp.eq.s32.totalorder %s18, 1
      %p35 = por %p33, %p34
      %p36 = scmp.ne.s32.totalorder %s28, %s31
      %p37 = scmp.eq.s32.totalorder %s18, 0
      %p38 = por %p36, %p37
      %p39 = scmp.ne.s32.totalorder %s28, %s31
      %p40 = scmp.eq.s32.totalorder %s23, 1
      %p41 = por %p39, %p40
      %p42 = scmp.ne.s32.totalorder %s31, %s32
      %p43 = scmp.eq.s32.totalorder %s23, 0
      %p44 = por %p42, %p43
      %p45 = scmp.ne.s32.totalorder %s31, %s32
      %p46 = scmp.eq.s32.totalorder %s24, 1
      %p47 = por %p45, %p46
      %p49 = scmp.ne.s32.totalorder %s32, %s48
      %p50 = scmp.eq.s32.totalorder %s24, 0
      %p51 = por %p49, %p50
      %s53 = sadd.s32 %s52, 1
      %p56 = scmp.eq.s32.totalorder %s18, 1
      %p57 = scmp.ne.s32.totalorder %s52, %s54
      %p58 = scmp.eq.s32.totalorder %s18, 0
      %p59 = por %p57, %p58
      %p60 = scmp.ne.s32.totalorder %s52, %s54
      %p61 = scmp.eq.s32.totalorder %s23, 1
      %p62 = por %p60, %p61
      %p63 = scmp.ne.s32.totalorder %s54, %s55
      %p64 = scmp.eq.s32.totalorder %s23, 0
      %p65 = por %p63, %p64
      %p66 = scmp.ne.s32.totalorder %s54, %s55
      %p67 = scmp.eq.s32.totalorder %s24, 1
      %p68 = por %p66, %p67
      %p70 = scmp.ne.s32.totalorder %s55, %s69
      %p71 = scmp.eq.s32.totalorder %s24, 0
      %p72 = por %p70, %p71
      %s74 = sadd.s32 %s73, 1
      %p77 = scmp.eq.s32.totalorder %s18, 1
      %p78 = scmp.ne.s32.totalorder %s73, %s75
      %p79 = scmp.eq.s32.totalorder %s18, 0
      %p80 = por %p78, %p79
      %p81 = scmp.ne.s32.totalorder %s73, %s75
      %p82 = scmp.eq.s32.totalorder %s23, 1
      %p83 = por %p81, %p82
      %p84 = scmp.ne.s32.totalorder %s75, %s76
      %p85 = scmp.eq.s32.totalorder %s23, 0
      %p86 = por %p84, %p85
      %p87 = scmp.ne.s32.totalorder %s75, %s76
      %p88 = scmp.eq.s32.totalorder %s24, 1
      %p89 = por %p87, %p88
      %p91 = scmp.ne.s32.totalorder %s76, %s90
      %p92 = scmp.eq.s32.totalorder %s24, 0
      %p93 = por %p91, %p92
      %s95 = sadd.s32 %s94, 1
      %p98 = scmp.eq.s32.totalorder %s18, 1
      %p99 = scmp.ne.s32.totalorder %s94, %s96
      %p100 = scmp.eq.s32.totalorder %s18, 0
      %p101 = por %p99, %p100
      %p102 = scmp.ne.s32.totalorder %s94, %s96
      %p103 = scmp.eq.s32.totalorder %s23, 1
      %p104 = por %p102, %p103
      %p105 = scmp.ne.s32.totalorder %s96, %s97
      %p106 = scmp.eq.s32.totalorder %s23, 0
      %p107 = por %p105, %p106
      %p108 = scmp.ne.s32.totalorder %s96, %s97
      %p109 = scmp.eq.s32.totalorder %s24, 1
      %p110 = por %p108, %p109
      %p112 = scmp.ne.s32.totalorder %s97, %s111
      %p113 = scmp.eq.s32.totalorder %s24, 0
      %p114 = por %p112, %p113
      %s116 = sadd.s32 %s115, 1
      %p119 = scmp.eq.s32.totalorder %s18, 1
      %p120 = scmp.ne.s32.totalorder %s115, %s117
      %p121 = scmp.eq.s32.totalorder %s18, 0
      %p122 = por %p120, %p121
      %p123 = scmp.ne.s32.totalorder %s115, %s117
      %p124 = scmp.eq.s32.totalorder %s23, 1
      %p125 = por %p123, %p124
      %p126 = scmp.ne.s32.totalorder %s117, %s118
      %p127 = scmp.eq.s32.totalorder %s23, 0
      %p128 = por %p126, %p127
      %p129 = scmp.ne.s32.totalorder %s117, %s118
      %p130 = scmp.eq.s32.totalorder %s24, 1
      %p131 = por %p129, %p130
      %p133 = scmp.ne.s32.totalorder %s118, %s132
      %p134 = scmp.eq.s32.totalorder %s24, 0
      %p135 = por %p133, %p134
      %s136 = ssub.s32 %s18, %s25
      %p137 = scmp.eq.s32.totalorder %s136, 0
      %s139 = sadd.s32 %s138, 1
      %s140 = scalar_select %p137, %s138, %s139
      %p143 = pneg %p137
      %p144 = scmp.eq.s32.totalorder %s18, 1
      %p145 = por %p143, %p144
      %p146 = scmp.ne.s32.totalorder %s138, %s141
      %p147 = scmp.eq.s32.totalorder %s18, 0
      %p148 = por %p146, %p147
      %p149 = scmp.ne.s32.totalorder %s138, %s141
      %p150 = scmp.eq.s32.totalorder %s23, 1
      %p151 = por %p149, %p150
      %p152 = scmp.ne.s32.totalorder %s141, %s142
      %p153 = scmp.eq.s32.totalorder %s23, 0
      %p154 = por %p152, %p153
      %p155 = scmp.ne.s32.totalorder %s141, %s142
      %p156 = scmp.eq.s32.totalorder %s24, 1
      %p157 = por %p155, %p156
      %p159 = scmp.ne.s32.totalorder %s142, %s158
      %p160 = scmp.eq.s32.totalorder %s24, 0
      %p161 = por %p159, %p160
      %p162 = scmp.le.s32.totalorder 1, %s18
      %p163 = scmp.lt.s32.totalorder %s18, 3
      %p164 = pnand %p162, %p163
      %p165 = pneg %p164
      // Predicated region
      $region9: #{tpu_custom_call.1} parent=5 // pred_check
        _
      $region10: #{tpu_custom_call.1} parent=5 // pred_check_branch
        %167 = sbr.rel (%p164) target = $region12
      $region11: #{tpu_custom_call.1} parent=5 // pred_region
        %s168 = ssub.s32 %s18, 1
        // Predicated region
        $region13: #{tpu_custom_call.1} parent=11 // pred_check
          %p169 = pneg %p65
        $region14: #{tpu_custom_call.1} parent=11 // pred_check_branch
          %171 = sbr.rel (%p169) target = $region16
        $region15: #{tpu_custom_call.1} parent=11 // pred_region
          %s173 = ssub.s32 1024, 1024
          %174 = vsyncadd [#allocation6], %s173
          %s175 = sshll.u32 [#allocation5], 4
          %s176 = int_to_ptr.vmem [resolvable:$true] %s175
          %181 = dma.hbm_to_vmem [thread:$0]  %s1, 1024, %s176, [#allocation6], 64, 64, 4
        $region16: #{tpu_custom_call.1} parent=11 // pred_fallthru
          _
        // Predicated region
        $region17: #{tpu_custom_call.1} parent=11 // pred_check
          %p182 = pneg %p86
        $region18: #{tpu_custom_call.1} parent=11 // pred_check_branch
          %184 = sbr.rel (%p182) target = $region20
        $region19: #{tpu_custom_call.1} parent=11 // pred_region
          _
        $region20: #{tpu_custom_call.1} parent=11 // pred_fallthru
          _
        // Predicated region
        $region21: #{tpu_custom_call.1} parent=11 // pred_check
          %p185 = pneg %p107
        $region22: #{tpu_custom_call.1} parent=11 // pred_check_branch
          %187 = sbr.rel (%p185) target = $region24
        $region23: #{tpu_custom_call.1} parent=11 // pred_region
          %s189 = ssub.s32 1024, 1024
          %190 = vsyncadd [#allocation6], %s189
          %s191 = sshll.u32 [#allocation7], 4
          %s192 = int_to_ptr.vmem [resolvable:$true] %s191
          %197 = dma.hbm_to_vmem [thread:$0]  %s3, 1024, %s192, [#allocation6], 64, 64, 4
        $region24: #{tpu_custom_call.1} parent=11 // pred_fallthru
          _
        // Predicated region
        $region25: #{tpu_custom_call.1} parent=11 // pred_check
          %p198 = pneg %p128
        $region26: #{tpu_custom_call.1} parent=11 // pred_check_branch
          %200 = sbr.rel (%p198) target = $region28
        $region27: #{tpu_custom_call.1} parent=11 // pred_region
          _
        $region28: #{tpu_custom_call.1} parent=11 // pred_fallthru
          _
      $region12: #{tpu_custom_call.1} parent=5 // pred_fallthru
        _
      %p201 = scmp.lt.s32.totalorder %s18, 2
      // Predicated region
      $region29: #{tpu_custom_call.1} parent=5 // pred_check
        %p202 = pneg %p201
      $region30: #{tpu_custom_call.1} parent=5 // pred_check_branch
        %204 = sbr.rel (%p202) target = $region32
      $region31: #{tpu_custom_call.1} parent=5 // pred_region
        // Predicated region
        $region33: #{tpu_custom_call.1} parent=31 // pred_check
          %p205 = pneg %p38
        $region34: #{tpu_custom_call.1} parent=31 // pred_check_branch
          %207 = sbr.rel (%p205) target = $region36
        $region35: #{tpu_custom_call.1} parent=31 // pred_region
          %s208 = sand.u32 %s28, 1
          %s209 = scalar_lea.sflag [#allocation3], %s208
          %s210 = sand.u32 %s28, 1
          %s211 = smul.addr %s210, 128
          %s212 = scalar_lea.vmem [#allocation2], %s211
          %s213 = smul.u32 32, %s18
          %s215 = ssub.s32 2048, 2048
          %216 = vsyncadd %s209, %s215
          %s217 = smul.addr %s213, 64
          %s218 = scalar_lea.hbm %s0, %s217
          %s219 = sshll.u32 %s212, 4
          %s220 = int_to_ptr.vmem [resolvable:$true] %s219
          %225 = dma.hbm_to_vmem [thread:$0]  %s218, 2048, %s220, %s209, 64, 64, 4
        $region36: #{tpu_custom_call.1} parent=31 // pred_fallthru
          _
      $region32: #{tpu_custom_call.1} parent=5 // pred_fallthru
        _
      %p226 = scmp.le.s32.totalorder 1, %s18
      %p227 = scmp.lt.s32.totalorder %s18, 3
      %p228 = pnand %p226, %p227
      %p229 = pneg %p228
      // Predicated region
      $region37: #{tpu_custom_call.1} parent=5 // pred_check
        _
      $region38: #{tpu_custom_call.1} parent=5 // pred_check_branch
        %231 = sbr.rel (%p228) target = $region40
      $region39: #{tpu_custom_call.1} parent=5 // pred_region
        %s232 = ssub.s32 %s18, 1
        %s233 = sand.u32 %s31, 1
        %s234 = scalar_lea.sflag [#allocation3], %s233
        %s235 = sand.u32 %s31, 1
        %s236 = smul.addr %s235, 128
        %s237 = scalar_lea.vmem [#allocation2], %s236
        // Predicated region
        $region41: #{tpu_custom_call.1} parent=39 // pred_check
          %p238 = pneg %p44
        $region42: #{tpu_custom_call.1} parent=39 // pred_check_branch
          %240 = sbr.rel (%p238) target = $region44
        $region43: #{tpu_custom_call.1} parent=39 // pred_region
          %241 = dma.done %s234, 2048
        $region44: #{tpu_custom_call.1} parent=39 // pred_fallthru
          _
        // Predicated region
        $region45: #{tpu_custom_call.1} parent=39 // pred_check
          %p242 = pneg %p65
        $region46: #{tpu_custom_call.1} parent=39 // pred_check_branch
          %244 = sbr.rel (%p242) target = $region48
        $region47: #{tpu_custom_call.1} parent=39 // pred_region
          %245 = dma.done [#allocation6], 1024
        $region48: #{tpu_custom_call.1} parent=39 // pred_fallthru
          _
        // Predicated region
        $region49: #{tpu_custom_call.1} parent=39 // pred_check
          %p246 = pneg %p107
        $region50: #{tpu_custom_call.1} parent=39 // pred_check_branch
          %248 = sbr.rel (%p246) target = $region52
        $region51: #{tpu_custom_call.1} parent=39 // pred_region
          %249 = dma.done [#allocation6], 1024
        $region52: #{tpu_custom_call.1} parent=39 // pred_fallthru
          _
        %s250 = sand.u32 %s31, 1
        %s251 = scalar_lea.sflag [#allocation3], %s250
        %s252 = sand.u32 %s31, 1
        %s253 = smul.addr %s252, 128
        %s254 = scalar_lea.vmem [#allocation2], %s253
        %p255 = pneg %p44
        %p256 = pneg %p41
        %p257 = pneg %p65
        %p258 = pneg %p62
        %p259 = pneg %p86
        %p260 = pneg %p83
        %p261 = pneg %p107
        %p262 = pneg %p104
        %p263 = pneg %p128
        %p264 = pneg %p125
        %p265 = pneg %p154
        %p266 = pneg %p151
        %s267 = sand.u32 %s141, 1
        %s268 = scalar_lea.sflag [#allocation4], %s267
        %s269 = sand.u32 %s141, 1
        %s270 = smul.addr %s269, 256
        %s271 = scalar_lea.vmem [#allocation8], %s270
        %s272 = smul.u32 32, %s23
        %s273 = smul.u32 32, %s23
        %v275 = vld [vmem:[%s237] sm:$0xf]
        %v276 = vld [vmem:[%s237 + $0x4] sm:$0xf]
        %v277 = vld [vmem:[%s237 + $0x8] sm:$0xf]
        %v278 = vld [vmem:[%s237 + $0xc] sm:$0xf]
        %v279 = vld [vmem:[%s237 + $0x10] sm:$0xf]
        %v280 = vld [vmem:[%s237 + $0x14] sm:$0xf]
        %v281 = vld [vmem:[%s237 + $0x18] sm:$0xf]
        %v282 = vld [vmem:[%s237 + $0x1c] sm:$0xf]
        %v283 = vld [vmem:[%s237 + $0x20] sm:$0xf]
        %v284 = vld [vmem:[%s237 + $0x24] sm:$0xf]
        %v285 = vld [vmem:[%s237 + $0x28] sm:$0xf]
        %v286 = vld [vmem:[%s237 + $0x2c] sm:$0xf]
        %v287 = vld [vmem:[%s237 + $0x30] sm:$0xf]
        %v288 = vld [vmem:[%s237 + $0x34] sm:$0xf]
        %v289 = vld [vmem:[%s237 + $0x38] sm:$0xf]
        %v290 = vld [vmem:[%s237 + $0x3c] sm:$0xf]
        %v291 = vld [vmem:[%s237 + $0x40] sm:$0xf]
        %v292 = vld [vmem:[%s237 + $0x44] sm:$0xf]
        %v293 = vld [vmem:[%s237 + $0x48] sm:$0xf]
        %v294 = vld [vmem:[%s237 + $0x4c] sm:$0xf]
        %v295 = vld [vmem:[%s237 + $0x50] sm:$0xf]
        %v296 = vld [vmem:[%s237 + $0x54] sm:$0xf]
        %v297 = vld [vmem:[%s237 + $0x58] sm:$0xf]
        %v298 = vld [vmem:[%s237 + $0x5c] sm:$0xf]
        %v299 = vld [vmem:[%s237 + $0x60] sm:$0xf]
        %v300 = vld [vmem:[%s237 + $0x64] sm:$0xf]
        %v301 = vld [vmem:[%s237 + $0x68] sm:$0xf]
        %v302 = vld [vmem:[%s237 + $0x6c] sm:$0xf]
        %v303 = vld [vmem:[%s237 + $0x70] sm:$0xf]
        %v304 = vld [vmem:[%s237 + $0x74] sm:$0xf]
        %v305 = vld [vmem:[%s237 + $0x78] sm:$0xf]
        %v306 = vld [vmem:[%s237 + $0x7c] sm:$0xf]
        %v307 = vld [vmem:[#allocation5] sm:$0xf]
        %v308 = vld [vmem:[#allocation5 + $0x4] sm:$0xf]
        %v309 = vld [vmem:[#allocation5 + $0x8] sm:$0xf]
        %v310 = vld [vmem:[#allocation5 + $0xc] sm:$0xf]
        %v311 = vld [vmem:[#allocation5 + $0x10] sm:$0xf]
        %v312 = vld [vmem:[#allocation5 + $0x14] sm:$0xf]
        %v313 = vld [vmem:[#allocation5 + $0x18] sm:$0xf]
        %v314 = vld [vmem:[#allocation5 + $0x1c] sm:$0xf]
        %v315 = vld [vmem:[#allocation5 + $0x20] sm:$0xf]
        %v316 = vld [vmem:[#allocation5 + $0x24] sm:$0xf]
        %v317 = vld [vmem:[#allocation5 + $0x28] sm:$0xf]
        %v318 = vld [vmem:[#allocation5 + $0x2c] sm:$0xf]
        %v319 = vld [vmem:[#allocation5 + $0x30] sm:$0xf]
        %v320 = vld [vmem:[#allocation5 + $0x34] sm:$0xf]
        %v321 = vld [vmem:[#allocation5 + $0x38] sm:$0xf]
        %v322 = vld [vmem:[#allocation5 + $0x3c] sm:$0xf]
        %v323 = vld [vmem:[%s2] sm:$0x1]
        %v325 = vlaneseq
        %v326 = vshrl.u32 %v325, 7
        %v327 = vsub.s32 0, %v326
        %v328 = vrot.slane %v323, %v327
        %v362 = vunpack.c.l.b16 %v275
        %v363 = vunpack.c.l.b16 %v276
        %v364 = vunpack.c.l.b16 %v277
        %v365 = vunpack.c.l.b16 %v278
        %v366 = vunpack.c.l.b16 %v279
        %v367 = vunpack.c.l.b16 %v280
        %v368 = vunpack.c.l.b16 %v281
        %v369 = vunpack.c.l.b16 %v282
        %v370 = vunpack.c.l.b16 %v283
        %v371 = vunpack.c.l.b16 %v284
        %v372 = vunpack.c.l.b16 %v285
        %v373 = vunpack.c.l.b16 %v286
        %v374 = vunpack.c.l.b16 %v287
        %v375 = vunpack.c.l.b16 %v288
        %v376 = vunpack.c.l.b16 %v289
        %v377 = vunpack.c.l.b16 %v290
        %v378 = vunpack.c.l.b16 %v291
        %v379 = vunpack.c.l.b16 %v292
        %v380 = vunpack.c.l.b16 %v293
        %v381 = vunpack.c.l.b16 %v294
        %v382 = vunpack.c.l.b16 %v295
        %v383 = vunpack.c.l.b16 %v296
        %v384 = vunpack.c.l.b16 %v297
        %v385 = vunpack.c.l.b16 %v298
        %v386 = vunpack.c.l.b16 %v299
        %v387 = vunpack.c.l.b16 %v300
        %v388 = vunpack.c.l.b16 %v301
        %v389 = vunpack.c.l.b16 %v302
        %v390 = vunpack.c.l.b16 %v303
        %v391 = vunpack.c.l.b16 %v304
        %v392 = vunpack.c.l.b16 %v305
        %v393 = vunpack.c.l.b16 %v306
        %v394 = vpack.c.b16 %v363, %v362
        %v395 = vpack.c.b16 %v365, %v364
        %v396 = vpack.c.b16 %v367, %v366
        %v397 = vpack.c.b16 %v369, %v368
        %v398 = vpack.c.b16 %v371, %v370
        %v399 = vpack.c.b16 %v373, %v372
        %v400 = vpack.c.b16 %v375, %v374
        %v401 = vpack.c.b16 %v377, %v376
        %v402 = vpack.c.b16 %v379, %v378
        %v403 = vpack.c.b16 %v381, %v380
        %v404 = vpack.c.b16 %v383, %v382
        %v405 = vpack.c.b16 %v385, %v384
        %v406 = vpack.c.b16 %v387, %v386
        %v407 = vpack.c.b16 %v389, %v388
        %v408 = vpack.c.b16 %v391, %v390
        %v409 = vpack.c.b16 %v393, %v392
        %v442 = vunpack.c.l.b16 %v307
        %v443 = vunpack.c.l.b16 %v308
        %v444 = vunpack.c.l.b16 %v309
        %v445 = vunpack.c.l.b16 %v310
        %v446 = vunpack.c.l.b16 %v311
        %v447 = vunpack.c.l.b16 %v312
        %v448 = vunpack.c.l.b16 %v313
        %v449 = vunpack.c.l.b16 %v314
        %v450 = vunpack.c.l.b16 %v315
        %v451 = vunpack.c.l.b16 %v316
        %v452 = vunpack.c.l.b16 %v317
        %v453 = vunpack.c.l.b16 %v318
        %v454 = vunpack.c.l.b16 %v319
        %v455 = vunpack.c.l.b16 %v320
        %v456 = vunpack.c.l.b16 %v321
        %v457 = vunpack.c.l.b16 %v322
        %v458 = vpack.c.b16 %v443, %v442
        %v459 = vpack.c.b16 %v445, %v444
        %v460 = vpack.c.b16 %v447, %v446
        %v461 = vpack.c.b16 %v449, %v448
        %v462 = vpack.c.b16 %v451, %v450
        %v463 = vpack.c.b16 %v453, %v452
        %v464 = vpack.c.b16 %v455, %v454
        %v465 = vpack.c.b16 %v457, %v456
        %474 = vmatprep.subr.bf16.mxu0 0
        %475 = vmatpush1.bf16.msra.mxu0 %v458
        %476 = vmatprep.subr.bf16.mxu0 0
        %477 = vmatpush1.bf16.msra.mxu0 %v459
        %478 = vmatprep.subr.bf16.mxu0 0
        %479 = vmatpush1.bf16.msra.mxu0 %v460
        %480 = vmatprep.subr.bf16.mxu0 0
        %481 = vmatpush1.bf16.msra.mxu0 %v461
        %482 = vmatprep.subr.bf16.mxu0 0
        %483 = vmatpush1.bf16.msra.mxu0 %v462
        %484 = vmatprep.subr.bf16.mxu0 0
        %485 = vmatpush1.bf16.msra.mxu0 %v463
        %486 = vmatprep.subr.bf16.mxu0 0
        %487 = vmatpush1.bf16.msra.mxu0 %v464
        %488 = vmatprep.subr.bf16.mxu0 0
        %489 = vmatpush1.bf16.msra.mxu0 %v465
        %490 = vmatprep.subr.bf16.mxu0 0
        %491 = vmatpush1.bf16.msra.mxu0 0
        %492 = vmatprep.subr.bf16.mxu0 0
        %493 = vmatpush1.bf16.msra.mxu0 0
        %494 = vmatprep.subr.bf16.mxu0 0
        %495 = vmatpush1.bf16.msra.mxu0 0
        %496 = vmatprep.subr.bf16.mxu0 0
        %497 = vmatpush1.bf16.msra.mxu0 0
        %498 = vmatprep.subr.bf16.mxu0 0
        %499 = vmatpush1.bf16.msra.mxu0 0
        %500 = vmatprep.subr.bf16.mxu0 0
        %501 = vmatpush1.bf16.msra.mxu0 0
        %502 = vmatprep.subr.bf16.mxu0 0
        %503 = vmatpush1.bf16.msra.mxu0 0
        %504 = vmatprep.subr.bf16.mxu0 0
        %505 = vmatpush1.bf16.msra.mxu0 0
        %506 = vmatprep.mubr.bf16.mxu0 0
        %507 = vmatmul.mubr.bf16.gmra.mrb[0].mxu0 %v394
        %v508 = vpop.f32.mrb[0].mxu0
        %v509 = vadd.f32 %v328, %v508
        %v510 = vpop.f32.mrb[0].mxu0
        %v511 = vpop.f32.mrb[0].mxu0
        %v512 = vadd.f32 %v328, %v511
        %v513 = vpop.f32.mrb[0].mxu0
        %514 = vmatprep.mubr.bf16.mxu0 0
        %515 = vmatmul.mubr.bf16.gmra.mrb[0].mxu0 %v395
        %v516 = vpop.f32.mrb[0].mxu0
        %v517 = vadd.f32 %v328, %v516
        %v518 = vpop.f32.mrb[0].mxu0
        %v519 = vpop.f32.mrb[0].mxu0
        %v520 = vadd.f32 %v328, %v519
        %v521 = vpop.f32.mrb[0].mxu0
        %522 = vmatprep.mubr.bf16.mxu0 0
        %523 = vmatmul.mubr.bf16.gmra.mrb[0].mxu0 %v396
        %v524 = vpop.f32.mrb[0].mxu0
        %v525 = vadd.f32 %v328, %v524
        %v526 = vpop.f32.mrb[0].mxu0
        %v527 = vpop.f32.mrb[0].mxu0
        %v528 = vadd.f32 %v328, %v527
        %v529 = vpop.f32.mrb[0].mxu0
        %530 = vmatprep.mubr.bf16.mxu0 0
        %531 = vmatmul.mubr.bf16.gmra.mrb[0].mxu0 %v397
        %v532 = vpop.f32.mrb[0].mxu0
        %v533 = vadd.f32 %v328, %v532
        %v534 = vpop.f32.mrb[0].mxu0
        %v535 = vpop.f32.mrb[0].mxu0
        %v536 = vadd.f32 %v328, %v535
        %v537 = vpop.f32.mrb[0].mxu0
        %538 = vmatprep.mubr.bf16.mxu0 0
        %539 = vmatmul.mubr.bf16.gmra.mrb[0].mxu0 %v398
        %v540 = vpop.f32.mrb[0].mxu0
        %v541 = vadd.f32 %v328, %v540
        %v542 = vpop.f32.mrb[0].mxu0
        %v543 = vpop.f32.mrb[0].mxu0
        %v544 = vadd.f32 %v328, %v543
        %v545 = vpop.f32.mrb[0].mxu0
        %546 = vmatprep.mubr.bf16.mxu0 0
        %547 = vmatmul.mubr.bf16.gmra.mrb[0].mxu0 %v399
        %v548 = vpop.f32.mrb[0].mxu0
        %v549 = vadd.f32 %v328, %v548
        %v550 = vpop.f32.mrb[0].mxu0
        %v551 = vpop.f32.mrb[0].mxu0
        %v552 = vadd.f32 %v328, %v551
        %v553 = vpop.f32.mrb[0].mxu0
        %554 = vmatprep.mubr.bf16.mxu0 0
        %555 = vmatmul.mubr.bf16.gmra.mrb[0].mxu0 %v400
        %v556 = vpop.f32.mrb[0].mxu0
        %v557 = vadd.f32 %v328, %v556
        %v558 = vpop.f32.mrb[0].mxu0
        %v559 = vpop.f32.mrb[0].mxu0
        %v560 = vadd.f32 %v328, %v559
        %v561 = vpop.f32.mrb[0].mxu0
        %562 = vmatprep.mubr.bf16.mxu0 0
        %563 = vmatmul.mubr.bf16.gmra.mrb[0].mxu0 %v401
        %v564 = vpop.f32.mrb[0].mxu0
        %v565 = vadd.f32 %v328, %v564
        %v566 = vpop.f32.mrb[0].mxu0
        %v567 = vpop.f32.mrb[0].mxu0
        %v568 = vadd.f32 %v328, %v567
        %v569 = vpop.f32.mrb[0].mxu0
        %570 = vmatprep.mubr.bf16.mxu0 0
        %571 = vmatmul.mubr.bf16.gmra.mrb[0].mxu0 %v402
        %v572 = vpop.f32.mrb[0].mxu0
        %v573 = vadd.f32 %v328, %v572
        %v574 = vpop.f32.mrb[0].mxu0
        %v575 = vpop.f32.mrb[0].mxu0
        %v576 = vadd.f32 %v328, %v575
        %v577 = vpop.f32.mrb[0].mxu0
        %578 = vmatprep.mubr.bf16.mxu0 0
        %579 = vmatmul.mubr.bf16.gmra.mrb[0].mxu0 %v403
        %v580 = vpop.f32.mrb[0].mxu0
        %v581 = vadd.f32 %v328, %v580
        %v582 = vpop.f32.mrb[0].mxu0
        %v583 = vpop.f32.mrb[0].mxu0
        %v584 = vadd.f32 %v328, %v583
        %v585 = vpop.f32.mrb[0].mxu0
        %586 = vmatprep.mubr.bf16.mxu0 0
        %587 = vmatmul.mubr.bf16.gmra.mrb[0].mxu0 %v404
        %v588 = vpop.f32.mrb[0].mxu0
        %v589 = vadd.f32 %v328, %v588
        %v590 = vpop.f32.mrb[0].mxu0
        %v591 = vpop.f32.mrb[0].mxu0
        %v592 = vadd.f32 %v328, %v591
        %v593 = vpop.f32.mrb[0].mxu0
        %594 = vmatprep.mubr.bf16.mxu0 0
        %595 = vmatmul.mubr.bf16.gmra.mrb[0].mxu0 %v405
        %v596 = vpop.f32.mrb[0].mxu0
        %v597 = vadd.f32 %v328, %v596
        %v598 = vpop.f32.mrb[0].mxu0
        %v599 = vpop.f32.mrb[0].mxu0
        %v600 = vadd.f32 %v328, %v599
        %v601 = vpop.f32.mrb[0].mxu0
        %602 = vmatprep.mubr.bf16.mxu0 0
        %603 = vmatmul.mubr.bf16.gmra.mrb[0].mxu0 %v406
        %v604 = vpop.f32.mrb[0].mxu0
        %v605 = vadd.f32 %v328, %v604
        %v606 = vpop.f32.mrb[0].mxu0
        %v607 = vpop.f32.mrb[0].mxu0
        %v608 = vadd.f32 %v328, %v607
        %v609 = vpop.f32.mrb[0].mxu0
        %610 = vmatprep.mubr.bf16.mxu0 0
        %611 = vmatmul.mubr.bf16.gmra.mrb[0].mxu0 %v407
        %v612 = vpop.f32.mrb[0].mxu0
        %v613 = vadd.f32 %v328, %v612
        %v614 = vpop.f32.mrb[0].mxu0
        %v615 = vpop.f32.mrb[0].mxu0
        %v616 = vadd.f32 %v328, %v615
        %v617 = vpop.f32.mrb[0].mxu0
        %618 = vmatprep.mubr.bf16.mxu0 0
        %619 = vmatmul.mubr.bf16.gmra.mrb[0].mxu0 %v408
        %v620 = vpop.f32.mrb[0].mxu0
        %v621 = vadd.f32 %v328, %v620
        %v622 = vpop.f32.mrb[0].mxu0
        %v623 = vpop.f32.mrb[0].mxu0
        %v624 = vadd.f32 %v328, %v623
        %v625 = vpop.f32.mrb[0].mxu0
        %626 = vmatprep.mubr.bf16.mxu0 0
        %627 = vmatmul.mubr.bf16.gmra.mrb[0].mxu0 %v409
        %v628 = vpop.f32.mrb[0].mxu0
        %v629 = vadd.f32 %v328, %v628
        %v630 = vpop.f32.mrb[0].mxu0
        %v631 = vpop.f32.mrb[0].mxu0
        %v632 = vadd.f32 %v328, %v631
        %v633 = vpop.f32.mrb[0].mxu0
        %634 = vdwg.mxu0
        %v635 = vmul.f32 %v509, 0.5
        %v636 = vmul.f32 %v512, 0.5
        %v637 = vmul.f32 %v517, 0.5
        %v638 = vmul.f32 %v520, 0.5
        %v639 = vmul.f32 %v525, 0.5
        %v640 = vmul.f32 %v528, 0.5
        %v641 = vmul.f32 %v533, 0.5
        %v642 = vmul.f32 %v536, 0.5
        %v643 = vmul.f32 %v541, 0.5
        %v644 = vmul.f32 %v544, 0.5
        %v645 = vmul.f32 %v549, 0.5
        %v646 = vmul.f32 %v552, 0.5
        %v647 = vmul.f32 %v557, 0.5
        %v648 = vmul.f32 %v560, 0.5
        %v649 = vmul.f32 %v565, 0.5
        %v650 = vmul.f32 %v568, 0.5
        %v651 = vmul.f32 %v573, 0.5
        %v652 = vmul.f32 %v576, 0.5
        %v653 = vmul.f32 %v581, 0.5
        %v654 = vmul.f32 %v584, 0.5
        %v655 = vmul.f32 %v589, 0.5
        %v656 = vmul.f32 %v592, 0.5
        %v657 = vmul.f32 %v597, 0.5
        %v658 = vmul.f32 %v600, 0.5
        %v659 = vmul.f32 %v605, 0.5
        %v660 = vmul.f32 %v608, 0.5
        %v661 = vmul.f32 %v613, 0.5
        %v662 = vmul.f32 %v616, 0.5
        %v663 = vmul.f32 %v621, 0.5
        %v664 = vmul.f32 %v624, 0.5
        %v665 = vmul.f32 %v629, 0.5
        %v666 = vmul.f32 %v632, 0.5
        %v667 = vmul.f32 %v509, 0.70710677
        %v668 = vmul.f32 %v512, 0.70710677
        %v669 = vmul.f32 %v517, 0.70710677
        %v670 = vmul.f32 %v520, 0.70710677
        %v671 = vmul.f32 %v525, 0.70710677
        %v672 = vmul.f32 %v528, 0.70710677
        %v673 = vmul.f32 %v533, 0.70710677
        %v674 = vmul.f32 %v536, 0.70710677
        %v675 = vmul.f32 %v541, 0.70710677
        %v676 = vmul.f32 %v544, 0.70710677
        %v677 = vmul.f32 %v549, 0.70710677
        %v678 = vmul.f32 %v552, 0.70710677
        %v679 = vmul.f32 %v557, 0.70710677
        %v680 = vmul.f32 %v560, 0.70710677
        %v681 = vmul.f32 %v565, 0.70710677
        %v682 = vmul.f32 %v568, 0.70710677
        %v683 = vmul.f32 %v573, 0.70710677
        %v684 = vmul.f32 %v576, 0.70710677
        %v685 = vmul.f32 %v581, 0.70710677
        %v686 = vmul.f32 %v584, 0.70710677
        %v687 = vmul.f32 %v589, 0.70710677
        %v688 = vmul.f32 %v592, 0.70710677
        %v689 = vmul.f32 %v597, 0.70710677
        %v690 = vmul.f32 %v600, 0.70710677
        %v691 = vmul.f32 %v605, 0.70710677
        %v692 = vmul.f32 %v608, 0.70710677
        %v693 = vmul.f32 %v613, 0.70710677
        %v694 = vmul.f32 %v616, 0.70710677
        %v695 = vmul.f32 %v621, 0.70710677
        %v696 = vmul.f32 %v624, 0.70710677
        %v697 = vmul.f32 %v629, 0.70710677
        %v698 = vmul.f32 %v632, 0.70710677
        %v699 = vand.u32 2147483647, %v667
        %v700 = vand.u32 2147483647, %v668
        %v701 = vand.u32 2147483647, %v669
        %v702 = vand.u32 2147483647, %v670
        %v703 = vand.u32 2147483647, %v671
        %v704 = vand.u32 2147483647, %v672
        %v705 = vand.u32 2147483647, %v673
        %v706 = vand.u32 2147483647, %v674
        %v707 = vand.u32 2147483647, %v675
        %v708 = vand.u32 2147483647, %v676
        %v709 = vand.u32 2147483647, %v677
        %v710 = vand.u32 2147483647, %v678
        %v711 = vand.u32 2147483647, %v679
        %v712 = vand.u32 2147483647, %v680
        %v713 = vand.u32 2147483647, %v681
        %v714 = vand.u32 2147483647, %v682
        %v715 = vand.u32 2147483647, %v683
        %v716 = vand.u32 2147483647, %v684
        %v717 = vand.u32 2147483647, %v685
        %v718 = vand.u32 2147483647, %v686
        %v719 = vand.u32 2147483647, %v687
        %v720 = vand.u32 2147483647, %v688
        %v721 = vand.u32 2147483647, %v689
        %v722 = vand.u32 2147483647, %v690
        %v723 = vand.u32 2147483647, %v691
        %v724 = vand.u32 2147483647, %v692
        %v725 = vand.u32 2147483647, %v693
        %v726 = vand.u32 2147483647, %v694
        %v727 = vand.u32 2147483647, %v695
        %v728 = vand.u32 2147483647, %v696
        %v729 = vand.u32 2147483647, %v697
        %v730 = vand.u32 2147483647, %v698
        %v731 = vmul.f32 %v699, 0.3275911
        %v732 = vmul.f32 %v700, 0.3275911
        %v733 = vmul.f32 %v701, 0.3275911
        %v734 = vmul.f32 %v702, 0.3275911
        %v735 = vmul.f32 %v703, 0.3275911
        %v736 = vmul.f32 %v704, 0.3275911
        %v737 = vmul.f32 %v705, 0.3275911
        %v738 = vmul.f32 %v706, 0.3275911
        %v739 = vmul.f32 %v707, 0.3275911
        %v740 = vmul.f32 %v708, 0.3275911
        %v741 = vmul.f32 %v709, 0.3275911
        %v742 = vmul.f32 %v710, 0.3275911
        %v743 = vmul.f32 %v711, 0.3275911
        %v744 = vmul.f32 %v712, 0.3275911
        %v745 = vmul.f32 %v713, 0.3275911
        %v746 = vmul.f32 %v714, 0.3275911
        %v747 = vmul.f32 %v715, 0.3275911
        %v748 = vmul.f32 %v716, 0.3275911
        %v749 = vmul.f32 %v717, 0.3275911
        %v750 = vmul.f32 %v718, 0.3275911
        %v751 = vmul.f32 %v719, 0.3275911
        %v752 = vmul.f32 %v720, 0.3275911
        %v753 = vmul.f32 %v721, 0.3275911
        %v754 = vmul.f32 %v722, 0.3275911
        %v755 = vmul.f32 %v723, 0.3275911
        %v756 = vmul.f32 %v724, 0.3275911
        %v757 = vmul.f32 %v725, 0.3275911
        %v758 = vmul.f32 %v726, 0.3275911
        %v759 = vmul.f32 %v727, 0.3275911
        %v760 = vmul.f32 %v728, 0.3275911
        %v761 = vmul.f32 %v729, 0.3275911
        %v762 = vmul.f32 %v730, 0.3275911
        %v763 = vadd.f32 %v731, 1.0
        %v764 = vadd.f32 %v732, 1.0
        %v765 = vadd.f32 %v733, 1.0
        %v766 = vadd.f32 %v734, 1.0
        %v767 = vadd.f32 %v735, 1.0
        %v768 = vadd.f32 %v736, 1.0
        %v769 = vadd.f32 %v737, 1.0
        %v770 = vadd.f32 %v738, 1.0
        %v771 = vadd.f32 %v739, 1.0
        %v772 = vadd.f32 %v740, 1.0
        %v773 = vadd.f32 %v741, 1.0
        %v774 = vadd.f32 %v742, 1.0
        %v775 = vadd.f32 %v743, 1.0
        %v776 = vadd.f32 %v744, 1.0
        %v777 = vadd.f32 %v745, 1.0
        %v778 = vadd.f32 %v746, 1.0
        %v779 = vadd.f32 %v747, 1.0
        %v780 = vadd.f32 %v748, 1.0
        %v781 = vadd.f32 %v749, 1.0
        %v782 = vadd.f32 %v750, 1.0
        %v783 = vadd.f32 %v751, 1.0
        %v784 = vadd.f32 %v752, 1.0
        %v785 = vadd.f32 %v753, 1.0
        %v786 = vadd.f32 %v754, 1.0
        %v787 = vadd.f32 %v755, 1.0
        %v788 = vadd.f32 %v756, 1.0
        %v789 = vadd.f32 %v757, 1.0
        %v790 = vadd.f32 %v758, 1.0
        %v791 = vadd.f32 %v759, 1.0
        %v792 = vadd.f32 %v760, 1.0
        %v793 = vadd.f32 %v761, 1.0
        %v794 = vadd.f32 %v762, 1.0
        %v795 = vrcp.pop %v763
        %v796 = vrcp.pop %v764
        %v797 = vrcp.pop %v765
        %v798 = vrcp.pop %v766
        %v799 = vrcp.pop %v767
        %v800 = vrcp.pop %v768
        %v801 = vrcp.pop %v769
        %v802 = vrcp.pop %v770
        %v803 = vrcp.pop %v771
        %v804 = vrcp.pop %v772
        %v805 = vrcp.pop %v773
        %v806 = vrcp.pop %v774
        %v807 = vrcp.pop %v775
        %v808 = vrcp.pop %v776
        %v809 = vrcp.pop %v777
        %v810 = vrcp.pop %v778
        %v811 = vrcp.pop %v779
        %v812 = vrcp.pop %v780
        %v813 = vrcp.pop %v781
        %v814 = vrcp.pop %v782
        %v815 = vrcp.pop %v783
        %v816 = vrcp.pop %v784
        %v817 = vrcp.pop %v785
        %v818 = vrcp.pop %v786
        %v819 = vrcp.pop %v787
        %v820 = vrcp.pop %v788
        %v821 = vrcp.pop %v789
        %v822 = vrcp.pop %v790
        %v823 = vrcp.pop %v791
        %v824 = vrcp.pop %v792
        %v825 = vrcp.pop %v793
        %v826 = vrcp.pop %v794
        %v827 = vmul.f32 %v795, 1.0614054
        %v828 = vmul.f32 %v796, 1.0614054
        %v829 = vmul.f32 %v797, 1.0614054
        %v830 = vmul.f32 %v798, 1.0614054
        %v831 = vmul.f32 %v799, 1.0614054
        %v832 = vmul.f32 %v800, 1.0614054
        %v833 = vmul.f32 %v801, 1.0614054
        %v834 = vmul.f32 %v802, 1.0614054
        %v835 = vmul.f32 %v803, 1.0614054
        %v836 = vmul.f32 %v804, 1.0614054
        %v837 = vmul.f32 %v805, 1.0614054
        %v838 = vmul.f32 %v806, 1.0614054
        %v839 = vmul.f32 %v807, 1.0614054
        %v840 = vmul.f32 %v808, 1.0614054
        %v841 = vmul.f32 %v809, 1.0614054
        %v842 = vmul.f32 %v810, 1.0614054
        %v843 = vmul.f32 %v811, 1.0614054
        %v844 = vmul.f32 %v812, 1.0614054
        %v845 = vmul.f32 %v813, 1.0614054
        %v846 = vmul.f32 %v814, 1.0614054
        %v847 = vmul.f32 %v815, 1.0614054
        %v848 = vmul.f32 %v816, 1.0614054
        %v849 = vmul.f32 %v817, 1.0614054
        %v850 = vmul.f32 %v818, 1.0614054
        %v851 = vmul.f32 %v819, 1.0614054
        %v852 = vmul.f32 %v820, 1.0614054
        %v853 = vmul.f32 %v821, 1.0614054
        %v854 = vmul.f32 %v822, 1.0614054
        %v855 = vmul.f32 %v823, 1.0614054
        %v856 = vmul.f32 %v824, 1.0614054
        %v857 = vmul.f32 %v825, 1.0614054
        %v858 = vmul.f32 %v826, 1.0614054
        %v859 = vadd.f32 %v827, -1.4531521
        %v860 = vadd.f32 %v828, -1.4531521
        %v861 = vadd.f32 %v829, -1.4531521
        %v862 = vadd.f32 %v830, -1.4531521
        %v863 = vadd.f32 %v831, -1.4531521
        %v864 = vadd.f32 %v832, -1.4531521
        %v865 = vadd.f32 %v833, -1.4531521
        %v866 = vadd.f32 %v834, -1.4531521
        %v867 = vadd.f32 %v835, -1.4531521
        %v868 = vadd.f32 %v836, -1.4531521
        %v869 = vadd.f32 %v837, -1.4531521
        %v870 = vadd.f32 %v838, -1.4531521
        %v871 = vadd.f32 %v839, -1.4531521
        %v872 = vadd.f32 %v840, -1.4531521
        %v873 = vadd.f32 %v841, -1.4531521
        %v874 = vadd.f32 %v842, -1.4531521
        %v875 = vadd.f32 %v843, -1.4531521
        %v876 = vadd.f32 %v844, -1.4531521
        %v877 = vadd.f32 %v845, -1.4531521
        %v878 = vadd.f32 %v846, -1.4531521
        %v879 = vadd.f32 %v847, -1.4531521
        %v880 = vadd.f32 %v848, -1.4531521
        %v881 = vadd.f32 %v849, -1.4531521
        %v882 = vadd.f32 %v850, -1.4531521
        %v883 = vadd.f32 %v851, -1.4531521
        %v884 = vadd.f32 %v852, -1.4531521
        %v885 = vadd.f32 %v853, -1.4531521
        %v886 = vadd.f32 %v854, -1.4531521
        %v887 = vadd.f32 %v855, -1.4531521
        %v888 = vadd.f32 %v856, -1.4531521
        %v889 = vadd.f32 %v857, -1.4531521
        %v890 = vadd.f32 %v858, -1.4531521
        %v891 = vmul.f32 %v795, %v859
        %v892 = vmul.f32 %v796, %v860
        %v893 = vmul.f32 %v797, %v861
        %v894 = vmul.f32 %v798, %v862
        %v895 = vmul.f32 %v799, %v863
        %v896 = vmul.f32 %v800, %v864
        %v897 = vmul.f32 %v801, %v865
        %v898 = vmul.f32 %v802, %v866
        %v899 = vmul.f32 %v803, %v867
        %v900 = vmul.f32 %v804, %v868
        %v901 = vmul.f32 %v805, %v869
        %v902 = vmul.f32 %v806, %v870
        %v903 = vmul.f32 %v807, %v871
        %v904 = vmul.f32 %v808, %v872
        %v905 = vmul.f32 %v809, %v873
        %v906 = vmul.f32 %v810, %v874
        %v907 = vmul.f32 %v811, %v875
        %v908 = vmul.f32 %v812, %v876
        %v909 = vmul.f32 %v813, %v877
        %v910 = vmul.f32 %v814, %v878
        %v911 = vmul.f32 %v815, %v879
        %v912 = vmul.f32 %v816, %v880
        %v913 = vmul.f32 %v817, %v881
        %v914 = vmul.f32 %v818, %v882
        %v915 = vmul.f32 %v819, %v883
        %v916 = vmul.f32 %v820, %v884
        %v917 = vmul.f32 %v821, %v885
        %v918 = vmul.f32 %v822, %v886
        %v919 = vmul.f32 %v823, %v887
        %v920 = vmul.f32 %v824, %v888
        %v921 = vmul.f32 %v825, %v889
        %v922 = vmul.f32 %v826, %v890
        %v923 = vadd.f32 %v891, 1.4214138
        %v924 = vadd.f32 %v892, 1.4214138
        %v925 = vadd.f32 %v893, 1.4214138
        %v926 = vadd.f32 %v894, 1.4214138
        %v927 = vadd.f32 %v895, 1.4214138
        %v928 = vadd.f32 %v896, 1.4214138
        %v929 = vadd.f32 %v897, 1.4214138
        %v930 = vadd.f32 %v898, 1.4214138
        %v931 = vadd.f32 %v899, 1.4214138
        %v932 = vadd.f32 %v900, 1.4214138
        %v933 = vadd.f32 %v901, 1.4214138
        %v934 = vadd.f32 %v902, 1.4214138
        %v935 = vadd.f32 %v903, 1.4214138
        %v936 = vadd.f32 %v904, 1.4214138
        %v937 = vadd.f32 %v905, 1.4214138
        %v938 = vadd.f32 %v906, 1.4214138
        %v939 = vadd.f32 %v907, 1.4214138
        %v940 = vadd.f32 %v908, 1.4214138
        %v941 = vadd.f32 %v909, 1.4214138
        %v942 = vadd.f32 %v910, 1.4214138
        %v943 = vadd.f32 %v911, 1.4214138
        %v944 = vadd.f32 %v912, 1.4214138
        %v945 = vadd.f32 %v913, 1.4214138
        %v946 = vadd.f32 %v914, 1.4214138
        %v947 = vadd.f32 %v915, 1.4214138
        %v948 = vadd.f32 %v916, 1.4214138
        %v949 = vadd.f32 %v917, 1.4214138
        %v950 = vadd.f32 %v918, 1.4214138
        %v951 = vadd.f32 %v919, 1.4214138
        %v952 = vadd.f32 %v920, 1.4214138
        %v953 = vadd.f32 %v921, 1.4214138
        %v954 = vadd.f32 %v922, 1.4214138
        %v955 = vmul.f32 %v795, %v923
        %v956 = vmul.f32 %v796, %v924
        %v957 = vmul.f32 %v797, %v925
        %v958 = vmul.f32 %v798, %v926
        %v959 = vmul.f32 %v799, %v927
        %v960 = vmul.f32 %v800, %v928
        %v961 = vmul.f32 %v801, %v929
        %v962 = vmul.f32 %v802, %v930
        %v963 = vmul.f32 %v803, %v931
        %v964 = vmul.f32 %v804, %v932
        %v965 = vmul.f32 %v805, %v933
        %v966 = vmul.f32 %v806, %v934
        %v967 = vmul.f32 %v807, %v935
        %v968 = vmul.f32 %v808, %v936
        %v969 = vmul.f32 %v809, %v937
        %v970 = vmul.f32 %v810, %v938
        %v971 = vmul.f32 %v811, %v939
        %v972 = vmul.f32 %v812, %v940
        %v973 = vmul.f32 %v813, %v941
        %v974 = vmul.f32 %v814, %v942
        %v975 = vmul.f32 %v815, %v943
        %v976 = vmul.f32 %v816, %v944
        %v977 = vmul.f32 %v817, %v945
        %v978 = vmul.f32 %v818, %v946
        %v979 = vmul.f32 %v819, %v947
        %v980 = vmul.f32 %v820, %v948
        %v981 = vmul.f32 %v821, %v949
        %v982 = vmul.f32 %v822, %v950
        %v983 = vmul.f32 %v823, %v951
        %v984 = vmul.f32 %v824, %v952
        %v985 = vmul.f32 %v825, %v953
        %v986 = vmul.f32 %v826, %v954
        %v987 = vadd.f32 %v955, -0.28449672
        %v988 = vadd.f32 %v956, -0.28449672
        %v989 = vadd.f32 %v957, -0.28449672
        %v990 = vadd.f32 %v958, -0.28449672
        %v991 = vadd.f32 %v959, -0.28449672
        %v992 = vadd.f32 %v960, -0.28449672
        %v993 = vadd.f32 %v961, -0.28449672
        %v994 = vadd.f32 %v962, -0.28449672
        %v995 = vadd.f32 %v963, -0.28449672
        %v996 = vadd.f32 %v964, -0.28449672
        %v997 = vadd.f32 %v965, -0.28449672
        %v998 = vadd.f32 %v966, -0.28449672
        %v999 = vadd.f32 %v967, -0.28449672
        %v1000 = vadd.f32 %v968, -0.28449672
        %v1001 = vadd.f32 %v969, -0.28449672
        %v1002 = vadd.f32 %v970, -0.28449672
        %v1003 = vadd.f32 %v971, -0.28449672
        %v1004 = vadd.f32 %v972, -0.28449672
        %v1005 = vadd.f32 %v973, -0.28449672
        %v1006 = vadd.f32 %v974, -0.28449672
        %v1007 = vadd.f32 %v975, -0.28449672
        %v1008 = vadd.f32 %v976, -0.28449672
        %v1009 = vadd.f32 %v977, -0.28449672
        %v1010 = vadd.f32 %v978, -0.28449672
        %v1011 = vadd.f32 %v979, -0.28449672
        %v1012 = vadd.f32 %v980, -0.28449672
        %v1013 = vadd.f32 %v981, -0.28449672
        %v1014 = vadd.f32 %v982, -0.28449672
        %v1015 = vadd.f32 %v983, -0.28449672
        %v1016 = vadd.f32 %v984, -0.28449672
        %v1017 = vadd.f32 %v985, -0.28449672
        %v1018 = vadd.f32 %v986, -0.28449672
        %v1019 = vmul.f32 %v795, %v987
        %v1020 = vmul.f32 %v796, %v988
        %v1021 = vmul.f32 %v797, %v989
        %v1022 = vmul.f32 %v798, %v990
        %v1023 = vmul.f32 %v799, %v991
        %v1024 = vmul.f32 %v800, %v992
        %v1025 = vmul.f32 %v801, %v993
        %v1026 = vmul.f32 %v802, %v994
        %v1027 = vmul.f32 %v803, %v995
        %v1028 = vmul.f32 %v804, %v996
        %v1029 = vmul.f32 %v805, %v997
        %v1030 = vmul.f32 %v806, %v998
        %v1031 = vmul.f32 %v807, %v999
        %v1032 = vmul.f32 %v808, %v1000
        %v1033 = vmul.f32 %v809, %v1001
        %v1034 = vmul.f32 %v810, %v1002
        %v1035 = vmul.f32 %v811, %v1003
        %v1036 = vmul.f32 %v812, %v1004
        %v1037 = vmul.f32 %v813, %v1005
        %v1038 = vmul.f32 %v814, %v1006
        %v1039 = vmul.f32 %v815, %v1007
        %v1040 = vmul.f32 %v816, %v1008
        %v1041 = vmul.f32 %v817, %v1009
        %v1042 = vmul.f32 %v818, %v1010
        %v1043 = vmul.f32 %v819, %v1011
        %v1044 = vmul.f32 %v820, %v1012
        %v1045 = vmul.f32 %v821, %v1013
        %v1046 = vmul.f32 %v822, %v1014
        %v1047 = vmul.f32 %v823, %v1015
        %v1048 = vmul.f32 %v824, %v1016
        %v1049 = vmul.f32 %v825, %v1017
        %v1050 = vmul.f32 %v826, %v1018
        %v1051 = vadd.f32 %v1019, 0.2548296
        %v1052 = vadd.f32 %v1020, 0.2548296
        %v1053 = vadd.f32 %v1021, 0.2548296
        %v1054 = vadd.f32 %v1022, 0.2548296
        %v1055 = vadd.f32 %v1023, 0.2548296
        %v1056 = vadd.f32 %v1024, 0.2548296
        %v1057 = vadd.f32 %v1025, 0.2548296
        %v1058 = vadd.f32 %v1026, 0.2548296
        %v1059 = vadd.f32 %v1027, 0.2548296
        %v1060 = vadd.f32 %v1028, 0.2548296
        %v1061 = vadd.f32 %v1029, 0.2548296
        %v1062 = vadd.f32 %v1030, 0.2548296
        %v1063 = vadd.f32 %v1031, 0.2548296
        %v1064 = vadd.f32 %v1032, 0.2548296
        %v1065 = vadd.f32 %v1033, 0.2548296
        %v1066 = vadd.f32 %v1034, 0.2548296
        %v1067 = vadd.f32 %v1035, 0.2548296
        %v1068 = vadd.f32 %v1036, 0.2548296
        %v1069 = vadd.f32 %v1037, 0.2548296
        %v1070 = vadd.f32 %v1038, 0.2548296
        %v1071 = vadd.f32 %v1039, 0.2548296
        %v1072 = vadd.f32 %v1040, 0.2548296
        %v1073 = vadd.f32 %v1041, 0.2548296
        %v1074 = vadd.f32 %v1042, 0.2548296
        %v1075 = vadd.f32 %v1043, 0.2548296
        %v1076 = vadd.f32 %v1044, 0.2548296
        %v1077 = vadd.f32 %v1045, 0.2548296
        %v1078 = vadd.f32 %v1046, 0.2548296
        %v1079 = vadd.f32 %v1047, 0.2548296
        %v1080 = vadd.f32 %v1048, 0.2548296
        %v1081 = vadd.f32 %v1049, 0.2548296
        %v1082 = vadd.f32 %v1050, 0.2548296
        %v1083 = vmul.f32 %v795, %v1051
        %v1084 = vmul.f32 %v796, %v1052
        %v1085 = vmul.f32 %v797, %v1053
        %v1086 = vmul.f32 %v798, %v1054
        %v1087 = vmul.f32 %v799, %v1055
        %v1088 = vmul.f32 %v800, %v1056
        %v1089 = vmul.f32 %v801, %v1057
        %v1090 = vmul.f32 %v802, %v1058
        %v1091 = vmul.f32 %v803, %v1059
        %v1092 = vmul.f32 %v804, %v1060
        %v1093 = vmul.f32 %v805, %v1061
        %v1094 = vmul.f32 %v806, %v1062
        %v1095 = vmul.f32 %v807, %v1063
        %v1096 = vmul.f32 %v808, %v1064
        %v1097 = vmul.f32 %v809, %v1065
        %v1098 = vmul.f32 %v810, %v1066
        %v1099 = vmul.f32 %v811, %v1067
        %v1100 = vmul.f32 %v812, %v1068
        %v1101 = vmul.f32 %v813, %v1069
        %v1102 = vmul.f32 %v814, %v1070
        %v1103 = vmul.f32 %v815, %v1071
        %v1104 = vmul.f32 %v816, %v1072
        %v1105 = vmul.f32 %v817, %v1073
        %v1106 = vmul.f32 %v818, %v1074
        %v1107 = vmul.f32 %v819, %v1075
        %v1108 = vmul.f32 %v820, %v1076
        %v1109 = vmul.f32 %v821, %v1077
        %v1110 = vmul.f32 %v822, %v1078
        %v1111 = vmul.f32 %v823, %v1079
        %v1112 = vmul.f32 %v824, %v1080
        %v1113 = vmul.f32 %v825, %v1081
        %v1114 = vmul.f32 %v826, %v1082
        %v1115 = vsub.f32 0.0, %v699
        %v1116 = vsub.f32 0.0, %v700
        %v1117 = vsub.f32 0.0, %v701
        %v1118 = vsub.f32 0.0, %v702
        %v1119 = vsub.f32 0.0, %v703
        %v1120 = vsub.f32 0.0, %v704
        %v1121 = vsub.f32 0.0, %v705
        %v1122 = vsub.f32 0.0, %v706
        %v1123 = vsub.f32 0.0, %v707
        %v1124 = vsub.f32 0.0, %v708
        %v1125 = vsub.f32 0.0, %v709
        %v1126 = vsub.f32 0.0, %v710
        %v1127 = vsub.f32 0.0, %v711
        %v1128 = vsub.f32 0.0, %v712
        %v1129 = vsub.f32 0.0, %v713
        %v1130 = vsub.f32 0.0, %v714
        %v1131 = vsub.f32 0.0, %v715
        %v1132 = vsub.f32 0.0, %v716
        %v1133 = vsub.f32 0.0, %v717
        %v1134 = vsub.f32 0.0, %v718
        %v1135 = vsub.f32 0.0, %v719
        %v1136 = vsub.f32 0.0, %v720
        %v1137 = vsub.f32 0.0, %v721
        %v1138 = vsub.f32 0.0, %v722
        %v1139 = vsub.f32 0.0, %v723
        %v1140 = vsub.f32 0.0, %v724
        %v1141 = vsub.f32 0.0, %v725
        %v1142 = vsub.f32 0.0, %v726
        %v1143 = vsub.f32 0.0, %v727
        %v1144 = vsub.f32 0.0, %v728
        %v1145 = vsub.f32 0.0, %v729
        %v1146 = vsub.f32 0.0, %v730
        %v1147 = vmul.f32 %v1115, %v699
        %v1148 = vmul.f32 %v1116, %v700
        %v1149 = vmul.f32 %v1117, %v701
        %v1150 = vmul.f32 %v1118, %v702
        %v1151 = vmul.f32 %v1119, %v703
        %v1152 = vmul.f32 %v1120, %v704
        %v1153 = vmul.f32 %v1121, %v705
        %v1154 = vmul.f32 %v1122, %v706
        %v1155 = vmul.f32 %v1123, %v707
        %v1156 = vmul.f32 %v1124, %v708
        %v1157 = vmul.f32 %v1125, %v709
        %v1158 = vmul.f32 %v1126, %v710
        %v1159 = vmul.f32 %v1127, %v711
        %v1160 = vmul.f32 %v1128, %v712
        %v1161 = vmul.f32 %v1129, %v713
        %v1162 = vmul.f32 %v1130, %v714
        %v1163 = vmul.f32 %v1131, %v715
        %v1164 = vmul.f32 %v1132, %v716
        %v1165 = vmul.f32 %v1133, %v717
        %v1166 = vmul.f32 %v1134, %v718
        %v1167 = vmul.f32 %v1135, %v719
        %v1168 = vmul.f32 %v1136, %v720
        %v1169 = vmul.f32 %v1137, %v721
        %v1170 = vmul.f32 %v1138, %v722
        %v1171 = vmul.f32 %v1139, %v723
        %v1172 = vmul.f32 %v1140, %v724
        %v1173 = vmul.f32 %v1141, %v725
        %v1174 = vmul.f32 %v1142, %v726
        %v1175 = vmul.f32 %v1143, %v727
        %v1176 = vmul.f32 %v1144, %v728
        %v1177 = vmul.f32 %v1145, %v729
        %v1178 = vmul.f32 %v1146, %v730
        %v1179 = vmul.f32 %v1147, 1.442695
        %v1180 = vpow.pop %v1179
        %v1181 = vmul.f32 %v1148, 1.442695
        %v1182 = vpow.pop %v1181
        %v1183 = vmul.f32 %v1149, 1.442695
        %v1184 = vpow.pop %v1183
        %v1185 = vmul.f32 %v1150, 1.442695
        %v1186 = vpow.pop %v1185
        %v1187 = vmul.f32 %v1151, 1.442695
        %v1188 = vpow.pop %v1187
        %v1189 = vmul.f32 %v1152, 1.442695
        %v1190 = vpow.pop %v1189
        %v1191 = vmul.f32 %v1153, 1.442695
        %v1192 = vpow.pop %v1191
        %v1193 = vmul.f32 %v1154, 1.442695
        %v1194 = vpow.pop %v1193
        %v1195 = vmul.f32 %v1155, 1.442695
        %v1196 = vpow.pop %v1195
        %v1197 = vmul.f32 %v1156, 1.442695
        %v1198 = vpow.pop %v1197
        %v1199 = vmul.f32 %v1157, 1.442695
        %v1200 = vpow.pop %v1199
        %v1201 = vmul.f32 %v1158, 1.442695
        %v1202 = vpow.pop %v1201
        %v1203 = vmul.f32 %v1159, 1.442695
        %v1204 = vpow.pop %v1203
        %v1205 = vmul.f32 %v1160, 1.442695
        %v1206 = vpow.pop %v1205
        %v1207 = vmul.f32 %v1161, 1.442695
        %v1208 = vpow.pop %v1207
        %v1209 = vmul.f32 %v1162, 1.442695
        %v1210 = vpow.pop %v1209
        %v1211 = vmul.f32 %v1163, 1.442695
        %v1212 = vpow.pop %v1211
        %v1213 = vmul.f32 %v1164, 1.442695
        %v1214 = vpow.pop %v1213
        %v1215 = vmul.f32 %v1165, 1.442695
        %v1216 = vpow.pop %v1215
        %v1217 = vmul.f32 %v1166, 1.442695
        %v1218 = vpow.pop %v1217
        %v1219 = vmul.f32 %v1167, 1.442695
        %v1220 = vpow.pop %v1219
        %v1221 = vmul.f32 %v1168, 1.442695
        %v1222 = vpow.pop %v1221
        %v1223 = vmul.f32 %v1169, 1.442695
        %v1224 = vpow.pop %v1223
        %v1225 = vmul.f32 %v1170, 1.442695
        %v1226 = vpow.pop %v1225
        %v1227 = vmul.f32 %v1171, 1.442695
        %v1228 = vpow.pop %v1227
        %v1229 = vmul.f32 %v1172, 1.442695
        %v1230 = vpow.pop %v1229
        %v1231 = vmul.f32 %v1173, 1.442695
        %v1232 = vpow.pop %v1231
        %v1233 = vmul.f32 %v1174, 1.442695
        %v1234 = vpow.pop %v1233
        %v1235 = vmul.f32 %v1175, 1.442695
        %v1236 = vpow.pop %v1235
        %v1237 = vmul.f32 %v1176, 1.442695
        %v1238 = vpow.pop %v1237
        %v1239 = vmul.f32 %v1177, 1.442695
        %v1240 = vpow.pop %v1239
        %v1241 = vmul.f32 %v1178, 1.442695
        %v1242 = vpow.pop %v1241
        %v1243 = vmul.f32 %v1083, %v1180
        %v1244 = vmul.f32 %v1084, %v1182
        %v1245 = vmul.f32 %v1085, %v1184
        %v1246 = vmul.f32 %v1086, %v1186
        %v1247 = vmul.f32 %v1087, %v1188
        %v1248 = vmul.f32 %v1088, %v1190
        %v1249 = vmul.f32 %v1089, %v1192
        %v1250 = vmul.f32 %v1090, %v1194
        %v1251 = vmul.f32 %v1091, %v1196
        %v1252 = vmul.f32 %v1092, %v1198
        %v1253 = vmul.f32 %v1093, %v1200
        %v1254 = vmul.f32 %v1094, %v1202
        %v1255 = vmul.f32 %v1095, %v1204
        %v1256 = vmul.f32 %v1096, %v1206
        %v1257 = vmul.f32 %v1097, %v1208
        %v1258 = vmul.f32 %v1098, %v1210
        %v1259 = vmul.f32 %v1099, %v1212
        %v1260 = vmul.f32 %v1100, %v1214
        %v1261 = vmul.f32 %v1101, %v1216
        %v1262 = vmul.f32 %v1102, %v1218
        %v1263 = vmul.f32 %v1103, %v1220
        %v1264 = vmul.f32 %v1104, %v1222
        %v1265 = vmul.f32 %v1105, %v1224
        %v1266 = vmul.f32 %v1106, %v1226
        %v1267 = vmul.f32 %v1107, %v1228
        %v1268 = vmul.f32 %v1108, %v1230
        %v1269 = vmul.f32 %v1109, %v1232
        %v1270 = vmul.f32 %v1110, %v1234
        %v1271 = vmul.f32 %v1111, %v1236
        %v1272 = vmul.f32 %v1112, %v1238
        %v1273 = vmul.f32 %v1113, %v1240
        %v1274 = vmul.f32 %v1114, %v1242
        %v1275 = vsub.f32 1.0, %v1243
        %v1276 = vsub.f32 1.0, %v1244
        %v1277 = vsub.f32 1.0, %v1245
        %v1278 = vsub.f32 1.0, %v1246
        %v1279 = vsub.f32 1.0, %v1247
        %v1280 = vsub.f32 1.0, %v1248
        %v1281 = vsub.f32 1.0, %v1249
        %v1282 = vsub.f32 1.0, %v1250
        %v1283 = vsub.f32 1.0, %v1251
        %v1284 = vsub.f32 1.0, %v1252
        %v1285 = vsub.f32 1.0, %v1253
        %v1286 = vsub.f32 1.0, %v1254
        %v1287 = vsub.f32 1.0, %v1255
        %v1288 = vsub.f32 1.0, %v1256
        %v1289 = vsub.f32 1.0, %v1257
        %v1290 = vsub.f32 1.0, %v1258
        %v1291 = vsub.f32 1.0, %v1259
        %v1292 = vsub.f32 1.0, %v1260
        %v1293 = vsub.f32 1.0, %v1261
        %v1294 = vsub.f32 1.0, %v1262
        %v1295 = vsub.f32 1.0, %v1263
        %v1296 = vsub.f32 1.0, %v1264
        %v1297 = vsub.f32 1.0, %v1265
        %v1298 = vsub.f32 1.0, %v1266
        %v1299 = vsub.f32 1.0, %v1267
        %v1300 = vsub.f32 1.0, %v1268
        %v1301 = vsub.f32 1.0, %v1269
        %v1302 = vsub.f32 1.0, %v1270
        %v1303 = vsub.f32 1.0, %v1271
        %v1304 = vsub.f32 1.0, %v1272
        %v1305 = vsub.f32 1.0, %v1273
        %v1306 = vsub.f32 1.0, %v1274
        %vm1307 = vcmp.lt.f32.partialorder %v667, 0.0
        %vm1308 = vcmp.lt.f32.partialorder %v668, 0.0
        %vm1309 = vcmp.lt.f32.partialorder %v669, 0.0
        %vm1310 = vcmp.lt.f32.partialorder %v670, 0.0
        %vm1311 = vcmp.lt.f32.partialorder %v671, 0.0
        %vm1312 = vcmp.lt.f32.partialorder %v672, 0.0
        %vm1313 = vcmp.lt.f32.partialorder %v673, 0.0
        %vm1314 = vcmp.lt.f32.partialorder %v674, 0.0
        %vm1315 = vcmp.lt.f32.partialorder %v675, 0.0
        %vm1316 = vcmp.lt.f32.partialorder %v676, 0.0
        %vm1317 = vcmp.lt.f32.partialorder %v677, 0.0
        %vm1318 = vcmp.lt.f32.partialorder %v678, 0.0
        %vm1319 = vcmp.lt.f32.partialorder %v679, 0.0
        %vm1320 = vcmp.lt.f32.partialorder %v680, 0.0
        %vm1321 = vcmp.lt.f32.partialorder %v681, 0.0
        %vm1322 = vcmp.lt.f32.partialorder %v682, 0.0
        %vm1323 = vcmp.lt.f32.partialorder %v683, 0.0
        %vm1324 = vcmp.lt.f32.partialorder %v684, 0.0
        %vm1325 = vcmp.lt.f32.partialorder %v685, 0.0
        %vm1326 = vcmp.lt.f32.partialorder %v686, 0.0
        %vm1327 = vcmp.lt.f32.partialorder %v687, 0.0
        %vm1328 = vcmp.lt.f32.partialorder %v688, 0.0
        %vm1329 = vcmp.lt.f32.partialorder %v689, 0.0
        %vm1330 = vcmp.lt.f32.partialorder %v690, 0.0
        %vm1331 = vcmp.lt.f32.partialorder %v691, 0.0
        %vm1332 = vcmp.lt.f32.partialorder %v692, 0.0
        %vm1333 = vcmp.lt.f32.partialorder %v693, 0.0
        %vm1334 = vcmp.lt.f32.partialorder %v694, 0.0
        %vm1335 = vcmp.lt.f32.partialorder %v695, 0.0
        %vm1336 = vcmp.lt.f32.partialorder %v696, 0.0
        %vm1337 = vcmp.lt.f32.partialorder %v697, 0.0
        %vm1338 = vcmp.lt.f32.partialorder %v698, 0.0
        %v1339 = vsub.f32 0.0, %v1275
        %v1340 = vsub.f32 0.0, %v1276
        %v1341 = vsub.f32 0.0, %v1277
        %v1342 = vsub.f32 0.0, %v1278
        %v1343 = vsub.f32 0.0, %v1279
        %v1344 = vsub.f32 0.0, %v1280
        %v1345 = vsub.f32 0.0, %v1281
        %v1346 = vsub.f32 0.0, %v1282
        %v1347 = vsub.f32 0.0, %v1283
        %v1348 = vsub.f32 0.0, %v1284
        %v1349 = vsub.f32 0.0, %v1285
        %v1350 = vsub.f32 0.0, %v1286
        %v1351 = vsub.f32 0.0, %v1287
        %v1352 = vsub.f32 0.0, %v1288
        %v1353 = vsub.f32 0.0, %v1289
        %v1354 = vsub.f32 0.0, %v1290
        %v1355 = vsub.f32 0.0, %v1291
        %v1356 = vsub.f32 0.0, %v1292
        %v1357 = vsub.f32 0.0, %v1293
        %v1358 = vsub.f32 0.0, %v1294
        %v1359 = vsub.f32 0.0, %v1295
        %v1360 = vsub.f32 0.0, %v1296
        %v1361 = vsub.f32 0.0, %v1297
        %v1362 = vsub.f32 0.0, %v1298
        %v1363 = vsub.f32 0.0, %v1299
        %v1364 = vsub.f32 0.0, %v1300
        %v1365 = vsub.f32 0.0, %v1301
        %v1366 = vsub.f32 0.0, %v1302
        %v1367 = vsub.f32 0.0, %v1303
        %v1368 = vsub.f32 0.0, %v1304
        %v1369 = vsub.f32 0.0, %v1305
        %v1370 = vsub.f32 0.0, %v1306
        %v1371 = vsel %vm1307, %v1339, %v1275
        %v1372 = vsel %vm1308, %v1340, %v1276
        %v1373 = vsel %vm1309, %v1341, %v1277
        %v1374 = vsel %vm1310, %v1342, %v1278
        %v1375 = vsel %vm1311, %v1343, %v1279
        %v1376 = vsel %vm1312, %v1344, %v1280
        %v1377 = vsel %vm1313, %v1345, %v1281
        %v1378 = vsel %vm1314, %v1346, %v1282
        %v1379 = vsel %vm1315, %v1347, %v1283
        %v1380 = vsel %vm1316, %v1348, %v1284
        %v1381 = vsel %vm1317, %v1349, %v1285
        %v1382 = vsel %vm1318, %v1350, %v1286
        %v1383 = vsel %vm1319, %v1351, %v1287
        %v1384 = vsel %vm1320, %v1352, %v1288
        %v1385 = vsel %vm1321, %v1353, %v1289
        %v1386 = vsel %vm1322, %v1354, %v1290
        %v1387 = vsel %vm1323, %v1355, %v1291
        %v1388 = vsel %vm1324, %v1356, %v1292
        %v1389 = vsel %vm1325, %v1357, %v1293
        %v1390 = vsel %vm1326, %v1358, %v1294
        %v1391 = vsel %vm1327, %v1359, %v1295
        %v1392 = vsel %vm1328, %v1360, %v1296
        %v1393 = vsel %vm1329, %v1361, %v1297
        %v1394 = vsel %vm1330, %v1362, %v1298
        %v1395 = vsel %vm1331, %v1363, %v1299
        %v1396 = vsel %vm1332, %v1364, %v1300
        %v1397 = vsel %vm1333, %v1365, %v1301
        %v1398 = vsel %vm1334, %v1366, %v1302
        %v1399 = vsel %vm1335, %v1367, %v1303
        %v1400 = vsel %vm1336, %v1368, %v1304
        %v1401 = vsel %vm1337, %v1369, %v1305
        %v1402 = vsel %vm1338, %v1370, %v1306
        %v1403 = vadd.f32 %v1371, 1.0
        %v1404 = vadd.f32 %v1372, 1.0
        %v1405 = vadd.f32 %v1373, 1.0
        %v1406 = vadd.f32 %v1374, 1.0
        %v1407 = vadd.f32 %v1375, 1.0
        %v1408 = vadd.f32 %v1376, 1.0
        %v1409 = vadd.f32 %v1377, 1.0
        %v1410 = vadd.f32 %v1378, 1.0
        %v1411 = vadd.f32 %v1379, 1.0
        %v1412 = vadd.f32 %v1380, 1.0
        %v1413 = vadd.f32 %v1381, 1.0
        %v1414 = vadd.f32 %v1382, 1.0
        %v1415 = vadd.f32 %v1383, 1.0
        %v1416 = vadd.f32 %v1384, 1.0
        %v1417 = vadd.f32 %v1385, 1.0
        %v1418 = vadd.f32 %v1386, 1.0
        %v1419 = vadd.f32 %v1387, 1.0
        %v1420 = vadd.f32 %v1388, 1.0
        %v1421 = vadd.f32 %v1389, 1.0
        %v1422 = vadd.f32 %v1390, 1.0
        %v1423 = vadd.f32 %v1391, 1.0
        %v1424 = vadd.f32 %v1392, 1.0
        %v1425 = vadd.f32 %v1393, 1.0
        %v1426 = vadd.f32 %v1394, 1.0
        %v1427 = vadd.f32 %v1395, 1.0
        %v1428 = vadd.f32 %v1396, 1.0
        %v1429 = vadd.f32 %v1397, 1.0
        %v1430 = vadd.f32 %v1398, 1.0
        %v1431 = vadd.f32 %v1399, 1.0
        %v1432 = vadd.f32 %v1400, 1.0
        %v1433 = vadd.f32 %v1401, 1.0
        %v1434 = vadd.f32 %v1402, 1.0
        %v1435 = vmul.f32 %v635, %v1403
        %v1436 = vmul.f32 %v636, %v1404
        %v1437 = vmul.f32 %v637, %v1405
        %v1438 = vmul.f32 %v638, %v1406
        %v1439 = vmul.f32 %v639, %v1407
        %v1440 = vmul.f32 %v640, %v1408
        %v1441 = vmul.f32 %v641, %v1409
        %v1442 = vmul.f32 %v642, %v1410
        %v1443 = vmul.f32 %v643, %v1411
        %v1444 = vmul.f32 %v644, %v1412
        %v1445 = vmul.f32 %v645, %v1413
        %v1446 = vmul.f32 %v646, %v1414
        %v1447 = vmul.f32 %v647, %v1415
        %v1448 = vmul.f32 %v648, %v1416
        %v1449 = vmul.f32 %v649, %v1417
        %v1450 = vmul.f32 %v650, %v1418
        %v1451 = vmul.f32 %v651, %v1419
        %v1452 = vmul.f32 %v652, %v1420
        %v1453 = vmul.f32 %v653, %v1421
        %v1454 = vmul.f32 %v654, %v1422
        %v1455 = vmul.f32 %v655, %v1423
        %v1456 = vmul.f32 %v656, %v1424
        %v1457 = vmul.f32 %v657, %v1425
        %v1458 = vmul.f32 %v658, %v1426
        %v1459 = vmul.f32 %v659, %v1427
        %v1460 = vmul.f32 %v660, %v1428
        %v1461 = vmul.f32 %v661, %v1429
        %v1462 = vmul.f32 %v662, %v1430
        %v1463 = vmul.f32 %v663, %v1431
        %v1464 = vmul.f32 %v664, %v1432
        %v1465 = vmul.f32 %v665, %v1433
        %v1466 = vmul.f32 %v666, %v1434
        %v1467 = vpack.c.bf16 %v1436, %v1435
        %v1468 = vpack.c.bf16 %v1438, %v1437
        %v1469 = vpack.c.bf16 %v1440, %v1439
        %v1470 = vpack.c.bf16 %v1442, %v1441
        %v1471 = vpack.c.bf16 %v1444, %v1443
        %v1472 = vpack.c.bf16 %v1446, %v1445
        %v1473 = vpack.c.bf16 %v1448, %v1447
        %v1474 = vpack.c.bf16 %v1450, %v1449
        %v1475 = vpack.c.bf16 %v1452, %v1451
        %v1476 = vpack.c.bf16 %v1454, %v1453
        %v1477 = vpack.c.bf16 %v1456, %v1455
        %v1478 = vpack.c.bf16 %v1458, %v1457
        %v1479 = vpack.c.bf16 %v1460, %v1459
        %v1480 = vpack.c.bf16 %v1462, %v1461
        %v1481 = vpack.c.bf16 %v1464, %v1463
        %v1482 = vpack.c.bf16 %v1466, %v1465
        %v1483 = vld [vmem:[#allocation7] sm:$0xf]
        %v1484 = vld [vmem:[#allocation7 + $0x4] sm:$0xf]
        %v1485 = vld [vmem:[#allocation7 + $0x8] sm:$0xf]
        %v1486 = vld [vmem:[#allocation7 + $0xc] sm:$0xf]
        %v1487 = vld [vmem:[#allocation7 + $0x10] sm:$0xf]
        %v1488 = vld [vmem:[#allocation7 + $0x14] sm:$0xf]
        %v1489 = vld [vmem:[#allocation7 + $0x18] sm:$0xf]
        %v1490 = vld [vmem:[#allocation7 + $0x1c] sm:$0xf]
        %v1491 = vld [vmem:[#allocation7 + $0x20] sm:$0xf]
        %v1492 = vld [vmem:[#allocation7 + $0x24] sm:$0xf]
        %v1493 = vld [vmem:[#allocation7 + $0x28] sm:$0xf]
        %v1494 = vld [vmem:[#allocation7 + $0x2c] sm:$0xf]
        %v1495 = vld [vmem:[#allocation7 + $0x30] sm:$0xf]
        %v1496 = vld [vmem:[#allocation7 + $0x34] sm:$0xf]
        %v1497 = vld [vmem:[#allocation7 + $0x38] sm:$0xf]
        %v1498 = vld [vmem:[#allocation7 + $0x3c] sm:$0xf]
        %v1499 = vld [vmem:[%s4] sm:$0x1]
        %v1501 = vlaneseq
        %v1502 = vshrl.u32 %v1501, 7
        %v1503 = vsub.s32 0, %v1502
        %v1504 = vrot.slane %v1499, %v1503
        %v1522 = vunpack.c.l.b16 %v1483
        %v1523 = vunpack.c.l.b16 %v1484
        %v1524 = vunpack.c.l.b16 %v1485
        %v1525 = vunpack.c.l.b16 %v1486
        %v1526 = vunpack.c.l.b16 %v1487
        %v1527 = vunpack.c.l.b16 %v1488
        %v1528 = vunpack.c.l.b16 %v1489
        %v1529 = vunpack.c.l.b16 %v1490
        %v1530 = vunpack.c.l.b16 %v1491
        %v1531 = vunpack.c.l.b16 %v1492
        %v1532 = vunpack.c.l.b16 %v1493
        %v1533 = vunpack.c.l.b16 %v1494
        %v1534 = vunpack.c.l.b16 %v1495
        %v1535 = vunpack.c.l.b16 %v1496
        %v1536 = vunpack.c.l.b16 %v1497
        %v1537 = vunpack.c.l.b16 %v1498
        %v1538 = vpack.c.b16 %v1523, %v1522
        %v1539 = vpack.c.b16 %v1525, %v1524
        %v1540 = vpack.c.b16 %v1527, %v1526
        %v1541 = vpack.c.b16 %v1529, %v1528
        %v1542 = vpack.c.b16 %v1531, %v1530
        %v1543 = vpack.c.b16 %v1533, %v1532
        %v1544 = vpack.c.b16 %v1535, %v1534
        %v1545 = vpack.c.b16 %v1537, %v1536
        %1554 = vmatprep.subr.bf16.mxu0 0
        %1555 = vmatpush1.bf16.msra.mxu0 %v1538
        %1556 = vmatprep.subr.bf16.mxu0 0
        %1557 = vmatpush1.bf16.msra.mxu0 %v1539
        %1558 = vmatprep.subr.bf16.mxu0 0
        %1559 = vmatpush1.bf16.msra.mxu0 %v1540
        %1560 = vmatprep.subr.bf16.mxu0 0
        %1561 = vmatpush1.bf16.msra.mxu0 %v1541
        %1562 = vmatprep.subr.bf16.mxu0 0
        %1563 = vmatpush1.bf16.msra.mxu0 %v1542
        %1564 = vmatprep.subr.bf16.mxu0 0
        %1565 = vmatpush1.bf16.msra.mxu0 %v1543
        %1566 = vmatprep.subr.bf16.mxu0 0
        %1567 = vmatpush1.bf16.msra.mxu0 %v1544
        %1568 = vmatprep.subr.bf16.mxu0 0
        %1569 = vmatpush1.bf16.msra.mxu0 %v1545
        %1570 = vmatprep.subr.bf16.mxu0 0
        %1571 = vmatpush1.bf16.msra.mxu0 0
        %1572 = vmatprep.subr.bf16.mxu0 0
        %1573 = vmatpush1.bf16.msra.mxu0 0
        %1574 = vmatprep.subr.bf16.mxu0 0
        %1575 = vmatpush1.bf16.msra.mxu0 0
        %1576 = vmatprep.subr.bf16.mxu0 0
        %1577 = vmatpush1.bf16.msra.mxu0 0
        %1578 = vmatprep.subr.bf16.mxu0 0
        %1579 = vmatpush1.bf16.msra.mxu0 0
        %1580 = vmatprep.subr.bf16.mxu0 0
        %1581 = vmatpush1.bf16.msra.mxu0 0
        %1582 = vmatprep.subr.bf16.mxu0 0
        %1583 = vmatpush1.bf16.msra.mxu0 0
        %1584 = vmatprep.subr.bf16.mxu0 0
        %1585 = vmatpush1.bf16.msra.mxu0 0
        %1586 = vmatprep.mubr.bf16.mxu0 0
        %1587 = vmatmul.mubr.bf16.gmra.mrb[0].mxu0 %v1467
        %v1588 = vpop.f32.mrb[0].mxu0
        %v1589 = vadd.f32 %v1504, %v1588
        %v1590 = vpop.f32.mrb[0].mxu0
        %v1591 = vpop.f32.mrb[0].mxu0
        %v1592 = vadd.f32 %v1504, %v1591
        %v1593 = vpop.f32.mrb[0].mxu0
        %1594 = vmatprep.mubr.bf16.mxu0 0
        %1595 = vmatmul.mubr.bf16.gmra.mrb[0].mxu0 %v1468
        %v1596 = vpop.f32.mrb[0].mxu0
        %v1597 = vadd.f32 %v1504, %v1596
        %v1598 = vpop.f32.mrb[0].mxu0
        %v1599 = vpop.f32.mrb[0].mxu0
        %v1600 = vadd.f32 %v1504, %v1599
        %v1601 = vpop.f32.mrb[0].mxu0
        %1602 = vmatprep.mubr.bf16.mxu0 0
        %1603 = vmatmul.mubr.bf16.gmra.mrb[0].mxu0 %v1469
        %v1604 = vpop.f32.mrb[0].mxu0
        %v1605 = vadd.f32 %v1504, %v1604
        %v1606 = vpop.f32.mrb[0].mxu0
        %v1607 = vpop.f32.mrb[0].mxu0
        %v1608 = vadd.f32 %v1504, %v1607
        %v1609 = vpop.f32.mrb[0].mxu0
        %1610 = vmatprep.mubr.bf16.mxu0 0
        %1611 = vmatmul.mubr.bf16.gmra.mrb[0].mxu0 %v1470
        %v1612 = vpop.f32.mrb[0].mxu0
        %v1613 = vadd.f32 %v1504, %v1612
        %v1614 = vpop.f32.mrb[0].mxu0
        %v1615 = vpop.f32.mrb[0].mxu0
        %v1616 = vadd.f32 %v1504, %v1615
        %v1617 = vpop.f32.mrb[0].mxu0
        %1618 = vmatprep.mubr.bf16.mxu0 0
        %1619 = vmatmul.mubr.bf16.gmra.mrb[0].mxu0 %v1471
        %v1620 = vpop.f32.mrb[0].mxu0
        %v1621 = vadd.f32 %v1504, %v1620
        %v1622 = vpop.f32.mrb[0].mxu0
        %v1623 = vpop.f32.mrb[0].mxu0
        %v1624 = vadd.f32 %v1504, %v1623
        %v1625 = vpop.f32.mrb[0].mxu0
        %1626 = vmatprep.mubr.bf16.mxu0 0
        %1627 = vmatmul.mubr.bf16.gmra.mrb[0].mxu0 %v1472
        %v1628 = vpop.f32.mrb[0].mxu0
        %v1629 = vadd.f32 %v1504, %v1628
        %v1630 = vpop.f32.mrb[0].mxu0
        %v1631 = vpop.f32.mrb[0].mxu0
        %v1632 = vadd.f32 %v1504, %v1631
        %v1633 = vpop.f32.mrb[0].mxu0
        %1634 = vmatprep.mubr.bf16.mxu0 0
        %1635 = vmatmul.mubr.bf16.gmra.mrb[0].mxu0 %v1473
        %v1636 = vpop.f32.mrb[0].mxu0
        %v1637 = vadd.f32 %v1504, %v1636
        %v1638 = vpop.f32.mrb[0].mxu0
        %v1639 = vpop.f32.mrb[0].mxu0
        %v1640 = vadd.f32 %v1504, %v1639
        %v1641 = vpop.f32.mrb[0].mxu0
        %1642 = vmatprep.mubr.bf16.mxu0 0
        %1643 = vmatmul.mubr.bf16.gmra.mrb[0].mxu0 %v1474
        %v1644 = vpop.f32.mrb[0].mxu0
        %v1645 = vadd.f32 %v1504, %v1644
        %v1646 = vpop.f32.mrb[0].mxu0
        %v1647 = vpop.f32.mrb[0].mxu0
        %v1648 = vadd.f32 %v1504, %v1647
        %v1649 = vpop.f32.mrb[0].mxu0
        %1650 = vmatprep.mubr.bf16.mxu0 0
        %1651 = vmatmul.mubr.bf16.gmra.mrb[0].mxu0 %v1475
        %v1652 = vpop.f32.mrb[0].mxu0
        %v1653 = vadd.f32 %v1504, %v1652
        %v1654 = vpop.f32.mrb[0].mxu0
        %v1655 = vpop.f32.mrb[0].mxu0
        %v1656 = vadd.f32 %v1504, %v1655
        %v1657 = vpop.f32.mrb[0].mxu0
        %1658 = vmatprep.mubr.bf16.mxu0 0
        %1659 = vmatmul.mubr.bf16.gmra.mrb[0].mxu0 %v1476
        %v1660 = vpop.f32.mrb[0].mxu0
        %v1661 = vadd.f32 %v1504, %v1660
        %v1662 = vpop.f32.mrb[0].mxu0
        %v1663 = vpop.f32.mrb[0].mxu0
        %v1664 = vadd.f32 %v1504, %v1663
        %v1665 = vpop.f32.mrb[0].mxu0
        %1666 = vmatprep.mubr.bf16.mxu0 0
        %1667 = vmatmul.mubr.bf16.gmra.mrb[0].mxu0 %v1477
        %v1668 = vpop.f32.mrb[0].mxu0
        %v1669 = vadd.f32 %v1504, %v1668
        %v1670 = vpop.f32.mrb[0].mxu0
        %v1671 = vpop.f32.mrb[0].mxu0
        %v1672 = vadd.f32 %v1504, %v1671
        %v1673 = vpop.f32.mrb[0].mxu0
        %1674 = vmatprep.mubr.bf16.mxu0 0
        %1675 = vmatmul.mubr.bf16.gmra.mrb[0].mxu0 %v1478
        %v1676 = vpop.f32.mrb[0].mxu0
        %v1677 = vadd.f32 %v1504, %v1676
        %v1678 = vpop.f32.mrb[0].mxu0
        %v1679 = vpop.f32.mrb[0].mxu0
        %v1680 = vadd.f32 %v1504, %v1679
        %v1681 = vpop.f32.mrb[0].mxu0
        %1682 = vmatprep.mubr.bf16.mxu0 0
        %1683 = vmatmul.mubr.bf16.gmra.mrb[0].mxu0 %v1479
        %v1684 = vpop.f32.mrb[0].mxu0
        %v1685 = vadd.f32 %v1504, %v1684
        %v1686 = vpop.f32.mrb[0].mxu0
        %v1687 = vpop.f32.mrb[0].mxu0
        %v1688 = vadd.f32 %v1504, %v1687
        %v1689 = vpop.f32.mrb[0].mxu0
        %1690 = vmatprep.mubr.bf16.mxu0 0
        %1691 = vmatmul.mubr.bf16.gmra.mrb[0].mxu0 %v1480
        %v1692 = vpop.f32.mrb[0].mxu0
        %v1693 = vadd.f32 %v1504, %v1692
        %v1694 = vpop.f32.mrb[0].mxu0
        %v1695 = vpop.f32.mrb[0].mxu0
        %v1696 = vadd.f32 %v1504, %v1695
        %v1697 = vpop.f32.mrb[0].mxu0
        %1698 = vmatprep.mubr.bf16.mxu0 0
        %1699 = vmatmul.mubr.bf16.gmra.mrb[0].mxu0 %v1481
        %v1700 = vpop.f32.mrb[0].mxu0
        %v1701 = vadd.f32 %v1504, %v1700
        %v1702 = vpop.f32.mrb[0].mxu0
        %v1703 = vpop.f32.mrb[0].mxu0
        %v1704 = vadd.f32 %v1504, %v1703
        %v1705 = vpop.f32.mrb[0].mxu0
        %1706 = vmatprep.mubr.bf16.mxu0 0
        %1707 = vmatmul.mubr.bf16.gmra.mrb[0].mxu0 %v1482
        %v1708 = vpop.f32.mrb[0].mxu0
        %v1709 = vadd.f32 %v1504, %v1708
        %v1710 = vpop.f32.mrb[0].mxu0
        %v1711 = vpop.f32.mrb[0].mxu0
        %v1712 = vadd.f32 %v1504, %v1711
        %v1713 = vpop.f32.mrb[0].mxu0
        %1714 = vdwg.mxu0
        %1715 = vst [vmem:[%s271] sm:$0xff] %v1589
        %1716 = vst [vmem:[%s271 + $0x8] sm:$0xff] %v1592
        %1717 = vst [vmem:[%s271 + $0x10] sm:$0xff] %v1597
        %1718 = vst [vmem:[%s271 + $0x18] sm:$0xff] %v1600
        %1719 = vst [vmem:[%s271 + $0x20] sm:$0xff] %v1605
        %1720 = vst [vmem:[%s271 + $0x28] sm:$0xff] %v1608
        %1721 = vst [vmem:[%s271 + $0x30] sm:$0xff] %v1613
        %1722 = vst [vmem:[%s271 + $0x38] sm:$0xff] %v1616
        %1723 = vst [vmem:[%s271 + $0x40] sm:$0xff] %v1621
        %1724 = vst [vmem:[%s271 + $0x48] sm:$0xff] %v1624
        %1725 = vst [vmem:[%s271 + $0x50] sm:$0xff] %v1629
        %1726 = vst [vmem:[%s271 + $0x58] sm:$0xff] %v1632
        %1727 = vst [vmem:[%s271 + $0x60] sm:$0xff] %v1637
        %1728 = vst [vmem:[%s271 + $0x68] sm:$0xff] %v1640
        %1729 = vst [vmem:[%s271 + $0x70] sm:$0xff] %v1645
        %1730 = vst [vmem:[%s271 + $0x78] sm:$0xff] %v1648
        %1731 = vst [vmem:[%s271 + $0x80] sm:$0xff] %v1653
        %1732 = vst [vmem:[%s271 + $0x88] sm:$0xff] %v1656
        %1733 = vst [vmem:[%s271 + $0x90] sm:$0xff] %v1661
        %1734 = vst [vmem:[%s271 + $0x98] sm:$0xff] %v1664
        %1735 = vst [vmem:[%s271 + $0xa0] sm:$0xff] %v1669
        %1736 = vst [vmem:[%s271 + $0xa8] sm:$0xff] %v1672
        %1737 = vst [vmem:[%s271 + $0xb0] sm:$0xff] %v1677
        %1738 = vst [vmem:[%s271 + $0xb8] sm:$0xff] %v1680
        %1739 = vst [vmem:[%s271 + $0xc0] sm:$0xff] %v1685
        %1740 = vst [vmem:[%s271 + $0xc8] sm:$0xff] %v1688
        %1741 = vst [vmem:[%s271 + $0xd0] sm:$0xff] %v1693
        %1742 = vst [vmem:[%s271 + $0xd8] sm:$0xff] %v1696
        %1743 = vst [vmem:[%s271 + $0xe0] sm:$0xff] %v1701
        %1744 = vst [vmem:[%s271 + $0xe8] sm:$0xff] %v1704
        %1745 = vst [vmem:[%s271 + $0xf0] sm:$0xff] %v1709
        %1746 = vst [vmem:[%s271 + $0xf8] sm:$0xff] %v1712
        %s1747 = sand.u32 %s141, 1
        %s1748 = scalar_lea.sflag [#allocation4], %s1747
        %s1749 = sand.u32 %s141, 1
        %s1750 = smul.addr %s1749, 256
        %s1751 = scalar_lea.vmem [#allocation8], %s1750
        // Predicated region
        $region53: #{tpu_custom_call.1} parent=39 // pred_check
          %p1752 = pneg %p151
        $region54: #{tpu_custom_call.1} parent=39 // pred_check_branch
          %1754 = sbr.rel (%p1752) target = $region56
        $region55: #{tpu_custom_call.1} parent=39 // pred_region
          %s1755 = smul.u32 32, %s23
          %s1757 = ssub.s32 4096, 4096
          %1758 = vsyncadd %s1748, %s1757
          %s1759 = smul.addr %s1755, 128
          %s1760 = scalar_lea.hbm %s5, %s1759
          %s1761 = sshll.u32 %s1751, 4
          %s1762 = int_to_ptr.vmem [resolvable:$true] %s1761
          %1767 = dma.vmem_to_hbm [thread:$0]  %s1762, 4096, %s1760, %s1748, 128, 128, 8
        $region56: #{tpu_custom_call.1} parent=39 // pred_fallthru
          _
      $region40: #{tpu_custom_call.1} parent=5 // pred_fallthru
        _
      %p1768 = scmp.le.s32.totalorder 2, %s18
      // Predicated region
      $region57: #{tpu_custom_call.1} parent=5 // pred_check
        %p1769 = pneg %p1768
      $region58: #{tpu_custom_call.1} parent=5 // pred_check_branch
        %1771 = sbr.rel (%p1769) target = $region60
      $region59: #{tpu_custom_call.1} parent=5 // pred_region
        %s1772 = ssub.s32 %s18, 2
        // Predicated region
        $region61: #{tpu_custom_call.1} parent=59 // pred_check
          %p1773 = pneg %p157
        $region62: #{tpu_custom_call.1} parent=59 // pred_check_branch
          %1775 = sbr.rel (%p1773) target = $region64
        $region63: #{tpu_custom_call.1} parent=59 // pred_region
          %s1776 = sand.u32 %s142, 1
          %s1777 = scalar_lea.sflag [#allocation4], %s1776
          %s1778 = sand.u32 %s142, 1
          %s1779 = smul.addr %s1778, 256
          %s1780 = scalar_lea.vmem [#allocation8], %s1779
          %1781 = dma.done %s1777, 4096
        $region64: #{tpu_custom_call.1} parent=59 // pred_fallthru
          _
      $region60: #{tpu_custom_call.1} parent=5 // pred_fallthru
        _
    $region6: #{tpu_custom_call.1} parent=1 // loop_footer
      %s22 = sadd.s32 1, %s18
    $region7: #{tpu_custom_call.1} parent=1 // loop_footer_branch
      %17 = sbr.rel target = $region3
    $region8: #{tpu_custom_call.1} parent=1 // loop_exit
      _
    %1782 = vsyncpa [#allocation3], 1
    %s1783 = scalar_lea.sflag [#allocation3], 1
    %1784 = vsyncpa %s1783, 1
    %1785 = vsyncpa [#allocation6], 1
    %1786 = vsyncpa [#allocation4], 1
    %s1787 = scalar_lea.sflag [#allocation4], 1
    %1788 = vsyncpa %s1787, 1

</llo_original>
